<compile_context>
chip_gen: v5e
topology: v5e:2x2
jax: 0.10.0
libtpu: 0.0.40
codegen_flags: <defaults>
</compile_context>

<pallas_src>
import functools

import jax
import jax.numpy as jnp
from jax.experimental import pallas as pl
from jax.experimental.pallas import tpu as pltpu


def attend_kernel(a_ref, b_ref, w1_ref, b1_ref, w2_ref, b2_ref,
                  beta_ref, alpha_ref, *, compute_dtype):
    bt, ta, e_dim = a_ref.shape
    _, tb, _ = b_ref.shape
    h_dim = w1_ref.shape[1]

    a = a_ref[...]                                  # [bt, Ta, E]  compute dtype
    b = b_ref[...]                                  # [bt, Tb, E]  compute dtype
    w1 = w1_ref[...]                                # [E, H]       compute dtype
    w2 = w2_ref[...]                                # [H, H]       compute dtype
    b1 = b1_ref[...]                                # [1, H]       f32
    b2 = b2_ref[...]                                # [1, H]       f32

    # TODO(synk): the two Dropout(0.2) layers inside f() are inference-mode
    # identities; training-mode dropout (pltpu.prng_*) is intentionally omitted.

    # ---- fused token-wise MLP over A and B: one big matmul pair -------------
    x = jnp.concatenate([a.reshape(bt * ta, e_dim),
                         b.reshape(bt * tb, e_dim)], axis=0)   # [bt*(Ta+Tb), E]
    h = jnp.dot(x, w1, preferred_element_type=jnp.float32) + b1
    h = jnp.maximum(h, 0.0)
    h = jnp.dot(h.astype(compute_dtype), w2,
                preferred_element_type=jnp.float32) + b2
    h = jnp.maximum(h, 0.0)
    fa = h[:bt * ta].reshape(bt, ta, h_dim).astype(compute_dtype)
    fb = h[bt * ta:].reshape(bt, tb, h_dim).astype(compute_dtype)

    # ---- attention scores ----------------------------------------------------
    # e = f_A @ f_B^T ; e^T recomputed as a second tiny NT matmul so every
    # contraction is a canonical MXU matmul (no in-kernel transposes).
    # TODO(synk): for large Ta/Tb, compute e once and reuse the exponentials
    # with a column-axis (XLU) reduce instead of this second matmul + exp.
    e = jnp.einsum('bth,bsh->bts', fa, fb,
                   preferred_element_type=jnp.float32)          # [bt, Ta, Tb]
    et = jnp.einsum('bsh,bth->bst', fb, fa,
                    preferred_element_type=jnp.float32)         # [bt, Tb, Ta]

    # beta = softmax(e, -1) @ B
    p = jnp.exp(e - jnp.max(e, axis=-1, keepdims=True))
    p = p * pl.reciprocal(jnp.sum(p, axis=-1, keepdims=True), approx=True)
    beta = jnp.einsum('bts,bse->bte', p.astype(compute_dtype), b,
                      preferred_element_type=jnp.float32)
    beta_ref[...] = beta.astype(beta_ref.dtype)

    # alpha = softmax(e^T, -1) @ A
    q = jnp.exp(et - jnp.max(et, axis=-1, keepdims=True))
    q = q * pl.reciprocal(jnp.sum(q, axis=-1, keepdims=True), approx=True)
    alpha = jnp.einsum('bst,bte->bse', q.astype(compute_dtype), a,
                       preferred_element_type=jnp.float32)
    alpha_ref[...] = alpha.astype(alpha_ref.dtype)


def _auto_batch_tile(bsz, ta, tb):
    """Largest divisor of bsz such that the flattened MLP M dim reaches ~256
    rows, while keeping >= 2 grid steps when the batch allows it (v7x 2 TCs)."""
    target = max(1, -(-256 // max(ta, tb)))                 # ceil(256 / T)
    divisors = [d for d in range(1, bsz + 1) if bsz % d == 0]
    bt = max([d for d in divisors if d <= target], default=1)
    if bsz // bt < 2:
        smaller = [d for d in divisors if bsz // d >= 2]
        if smaller:
            bt = max(smaller)
    return bt


def attend_forward(A, B, w1, b1, w2, b2, *, batch_tile=None,
                   compute_dtype=jnp.bfloat16, out_dtype=jnp.float32,
                   vmem_limit_bytes=32 * 1024 * 1024):
    bsz, ta, e_dim = A.shape
    bsz_b, tb, e_dim_b = B.shape
    assert bsz == bsz_b and e_dim == e_dim_b
    h_dim = w1.shape[1]

    if batch_tile is None:
        batch_tile = _auto_batch_tile(bsz, ta, tb)
    assert bsz % batch_tile == 0, "batch must be divisible by batch_tile"

    # Explicit VMEM budget (matters on v7x: 64 MiB physical / 32 MiB scoped):
    # shrink the batch tile instead of overflowing the scoped limit.
    act_bytes = jnp.dtype(compute_dtype).itemsize
    out_bytes = jnp.dtype(out_dtype).itemsize

    def vmem_est(bt_):
        acts = bt_ * (ta + tb) * e_dim * act_bytes
        outs = bt_ * (ta + tb) * e_dim * out_bytes
        wgts = (e_dim * h_dim + h_dim * h_dim) * act_bytes + 2 * h_dim * 4
        return 2 * (acts + outs + wgts)                      # double-buffered

    while batch_tile > 1 and vmem_est(batch_tile) > vmem_limit_bytes // 2:
        batch_tile = max(d for d in range(1, batch_tile) if bsz % d == 0)

    grid = (bsz // batch_tile,)

    # Cast at the call boundary so the per-step DMA actually moves bf16 bytes.
    A_c = A.astype(compute_dtype)
    B_c = B.astype(compute_dtype)
    w1_c = w1.astype(compute_dtype)
    w2_c = w2.astype(compute_dtype)
    b1_f = b1.astype(jnp.float32)
    b2_f = b2.astype(jnp.float32)

    kernel = functools.partial(attend_kernel, compute_dtype=compute_dtype)

    return pl.pallas_call(
        kernel,
        out_shape=(jax.ShapeDtypeStruct((bsz, ta, e_dim), out_dtype),
                   jax.ShapeDtypeStruct((bsz, tb, e_dim), out_dtype)),
        grid_spec=pltpu.PrefetchScalarGridSpec(
            num_scalar_prefetch=0,
            grid=grid,
            in_specs=[
                # streamed activations: one batch tile per grid step
                pl.BlockSpec((batch_tile, ta, e_dim), lambda i: (i, 0, 0)),
                pl.BlockSpec((batch_tile, tb, e_dim), lambda i: (i, 0, 0)),
                # weights / biases: constant block index -> VMEM-resident,
                # no re-DMA across grid steps.
                # TODO(synk): at large H add pipeline_mode=pl.Buffered(1) here
                # to avoid double-buffering constant operands (v7x VMEM).
                pl.BlockSpec((e_dim, h_dim), lambda i: (0, 0)),
                pl.BlockSpec((1, h_dim), lambda i: (0, 0)),
                pl.BlockSpec((h_dim, h_dim), lambda i: (0, 0)),
                pl.BlockSpec((1, h_dim), lambda i: (0, 0)),
            ],
            out_specs=(
                pl.BlockSpec((batch_tile, ta, e_dim), lambda i: (i, 0, 0)),
                pl.BlockSpec((batch_tile, tb, e_dim), lambda i: (i, 0, 0)),
            ),
        ),
        compiler_params=pltpu.CompilerParams(
            dimension_semantics=("parallel",),
            vmem_limit_bytes=vmem_limit_bytes,
        ),
    )(A_c, B_c, w1_c, b1_f, w2_c, b2_f)


def _linear_params(key, fan_in, fan_out):
    """nn.Linear-style init (uniform +-1/sqrt(fan_in)), pre-transposed to [in, out]."""
    kw, kb = jax.random.split(key)
    bound = 1.0 / jnp.sqrt(float(fan_in))
    w = jax.random.uniform(kw, (fan_in, fan_out), jnp.float32, -bound, bound)
    b = jax.random.uniform(kb, (1, fan_out), jnp.float32, -bound, bound)
    return w, b


if __name__ == "__main__":
    # Small, tile-friendly shapes consistent with the module.  batch=32 with
    # the auto batch_tile=16 gives 256-row MLP matmuls and a 2-step grid.
    batch_size = 32
    num_tokens_a = 16       # premise length
    num_tokens_b = 8        # hypothesis length
    embed_size = 128        # lane-aligned embedding width
    num_hiddens = 128       # MLP width

    key = jax.random.PRNGKey(0)
    k_a, k_b, k1, k2 = jax.random.split(key, 4)

    A = jax.random.normal(k_a, (batch_size, num_tokens_a, embed_size), jnp.float32)
    B = jax.random.normal(k_b, (batch_size, num_tokens_b, embed_size), jnp.float32)

    w1, b1 = _linear_params(k1, embed_size, num_hiddens)   # mlp linear 1
    w2, b2 = _linear_params(k2, num_hiddens, num_hiddens)  # mlp linear 2

    beta, alpha = attend_forward(A, B, w1, b1, w2, b2)
    beta, alpha = jax.block_until_ready((beta, alpha))

    # Pure-JAX reference mimicking the kernel's bf16 operand casts (f32 accum).
    cd = jnp.bfloat16

    def f(x):
        h = jnp.dot(x.astype(cd), w1.astype(cd),
                    preferred_element_type=jnp.float32) + b1
        h = jnp.maximum(h, 0.0)
        h = jnp.dot(h.astype(cd), w2.astype(cd),
                    preferred_element_type=jnp.float32) + b2
        return jnp.maximum(h, 0.0)

    f_A, f_B = f(A), f(B)
    e = jnp.einsum('bth,bsh->bts', f_A.astype(cd), f_B.astype(cd),
                   preferred_element_type=jnp.float32)
    beta_ref = jnp.einsum('bts,bse->bte',
                          jax.nn.softmax(e, axis=-1).astype(cd), B.astype(cd),
                          preferred_element_type=jnp.float32)
    alpha_ref = jnp.einsum('bst,bte->bse',
                           jax.nn.softmax(jnp.swapaxes(e, 1, 2), axis=-1).astype(cd),
                           A.astype(cd),
                           preferred_element_type=jnp.float32)

    assert beta.shape == (batch_size, num_tokens_a, embed_size)
    assert alpha.shape == (batch_size, num_tokens_b, embed_size)
    assert jnp.allclose(beta, beta_ref, atol=2e-2, rtol=2e-2)
    assert jnp.allclose(alpha, alpha_ref, atol=2e-2, rtol=2e-2)
    print("KERNEL_OK")
</pallas_src>

<mosaic_0001>
module attributes {stable_mosaic.version = 11 : i64} {
  func.func @attend_kernel(%arg0: i32, %arg1: memref<16x16x128xbf16, #tpu.memory_space<vmem>>, %arg2: memref<16x8x128xbf16, #tpu.memory_space<vmem>>, %arg3: memref<128x128xbf16, #tpu.memory_space<vmem>>, %arg4: memref<1x128xf32, #tpu.memory_space<vmem>>, %arg5: memref<128x128xbf16, #tpu.memory_space<vmem>>, %arg6: memref<1x128xf32, #tpu.memory_space<vmem>>, %arg7: memref<16x16x128xf32, #tpu.memory_space<vmem>>, %arg8: memref<16x8x128xf32, #tpu.memory_space<vmem>>) attributes {dimension_semantics = [#tpu.dimension_semantics<parallel>], iteration_bounds = array<i64: 2>, scalar_prefetch = 0 : i64, scratch_operands = 0 : i64, tpu.core_type = #tpu.core_type<tc>, window_params = [{transform_indices = @transform_0, window_bounds = array<i64: 16, 16, 128>}, {transform_indices = @transform_1, window_bounds = array<i64: 16, 8, 128>}, {pipeline_mode = #tpu.pipeline_mode<synchronous>, transform_indices = @transform_2, window_bounds = array<i64: 128, 128>}, {pipeline_mode = #tpu.pipeline_mode<synchronous>, transform_indices = @transform_3, window_bounds = array<i64: 1, 128>}, {pipeline_mode = #tpu.pipeline_mode<synchronous>, transform_indices = @transform_4, window_bounds = array<i64: 128, 128>}, {pipeline_mode = #tpu.pipeline_mode<synchronous>, transform_indices = @transform_5, window_bounds = array<i64: 1, 128>}, {transform_indices = @transform_6, window_bounds = array<i64: 16, 16, 128>}, {transform_indices = @transform_7, window_bounds = array<i64: 16, 8, 128>}]} {
    %c0 = arith.constant 0 : index
    %c0_0 = arith.constant 0 : index
    %c0_1 = arith.constant 0 : index
    %0 = vector.load %arg1[%c0, %c0_0, %c0_1] : memref<16x16x128xbf16, #tpu.memory_space<vmem>>, vector<16x16x128xbf16>
    %c0_2 = arith.constant 0 : index
    %c0_3 = arith.constant 0 : index
    %c0_4 = arith.constant 0 : index
    %1 = vector.load %arg2[%c0_2, %c0_3, %c0_4] : memref<16x8x128xbf16, #tpu.memory_space<vmem>>, vector<16x8x128xbf16>
    %c0_5 = arith.constant 0 : index
    %c0_6 = arith.constant 0 : index
    %2 = vector.load %arg3[%c0_5, %c0_6] : memref<128x128xbf16, #tpu.memory_space<vmem>>, vector<128x128xbf16>
    %c0_7 = arith.constant 0 : index
    %c0_8 = arith.constant 0 : index
    %3 = vector.load %arg5[%c0_7, %c0_8] : memref<128x128xbf16, #tpu.memory_space<vmem>>, vector<128x128xbf16>
    %c0_9 = arith.constant 0 : index
    %c0_10 = arith.constant 0 : index
    %4 = vector.load %arg4[%c0_9, %c0_10] : memref<1x128xf32, #tpu.memory_space<vmem>>, vector<1x128xf32>
    %c0_11 = arith.constant 0 : index
    %c0_12 = arith.constant 0 : index
    %5 = vector.load %arg6[%c0_11, %c0_12] : memref<1x128xf32, #tpu.memory_space<vmem>>, vector<1x128xf32>
    %6 = vector.shape_cast %0 : vector<16x16x128xbf16> to vector<256x128xbf16>
    %7 = vector.shape_cast %1 : vector<16x8x128xbf16> to vector<128x128xbf16>
    %8 = tpu.concatenate %6, %7 in 0 : vector<256x128xbf16>, vector<128x128xbf16> -> vector<384x128xbf16>
    %cst = arith.constant dense<0.000000e+00> : vector<384x128xf32>
    %9 = tpu.matmul %8, %2, %cst {dimension_numbers = #tpu.dot_dimension_numbers<[1], [0], [0], [1], [0, 0, 1, 1], [], []>} : vector<384x128xbf16>, vector<128x128xbf16>, vector<384x128xf32> -> vector<384x128xf32>
    %10 = vector.broadcast %4 : vector<1x128xf32> to vector<384x128xf32>
    %11 = arith.addf %9, %10 : vector<384x128xf32>
    %cst_13 = arith.constant 0.000000e+00 : f32
    %12 = vector.broadcast %cst_13 : f32 to vector<384x128xf32>
    %13 = arith.maximumf %11, %12 : vector<384x128xf32>
    %14 = arith.truncf %13 : vector<384x128xf32> to vector<384x128xbf16>
    %cst_14 = arith.constant dense<0.000000e+00> : vector<384x128xf32>
    %15 = tpu.matmul %14, %3, %cst_14 {dimension_numbers = #tpu.dot_dimension_numbers<[1], [0], [0], [1], [0, 0, 1, 1], [], []>} : vector<384x128xbf16>, vector<128x128xbf16>, vector<384x128xf32> -> vector<384x128xf32>
    %16 = vector.broadcast %5 : vector<1x128xf32> to vector<384x128xf32>
    %17 = arith.addf %15, %16 : vector<384x128xf32>
    %cst_15 = arith.constant 0.000000e+00 : f32
    %18 = vector.broadcast %cst_15 : f32 to vector<384x128xf32>
    %19 = arith.maximumf %17, %18 : vector<384x128xf32>
    %20 = vector.extract_strided_slice %19 {offsets = [0, 0], sizes = [256, 128], strides = [1, 1]} : vector<384x128xf32> to vector<256x128xf32>
    %21 = vector.shape_cast %20 : vector<256x128xf32> to vector<16x16x128xf32>
    %22 = arith.truncf %21 : vector<16x16x128xf32> to vector<16x16x128xbf16>
    %23 = vector.extract_strided_slice %19 {offsets = [256, 0], sizes = [128, 128], strides = [1, 1]} : vector<384x128xf32> to vector<128x128xf32>
    %24 = vector.shape_cast %23 : vector<128x128xf32> to vector<16x8x128xf32>
    %25 = arith.truncf %24 : vector<16x8x128xf32> to vector<16x8x128xbf16>
    "tpu.trace_start"() <{level = 10 : i32, message = "bth,bsh->bts"}> : () -> ()
    %cst_16 = arith.constant dense<0.000000e+00> : vector<16x16x8xf32>
    %26 = tpu.matmul %22, %25, %cst_16 {dimension_numbers = #tpu.dot_dimension_numbers<[2], [2], [1], [1], [0, 0, 0, 1, 1, 1], [0], [0]>} : vector<16x16x128xbf16>, vector<16x8x128xbf16>, vector<16x16x8xf32> -> vector<16x16x8xf32>
    "tpu.trace_stop"() : () -> ()
    "tpu.trace_start"() <{level = 10 : i32, message = "bsh,bth->bst"}> : () -> ()
    %cst_17 = arith.constant dense<0.000000e+00> : vector<16x8x16xf32>
    %27 = tpu.matmul %25, %22, %cst_17 {dimension_numbers = #tpu.dot_dimension_numbers<[2], [2], [1], [1], [0, 0, 0, 1, 1, 1], [0], [0]>} : vector<16x8x128xbf16>, vector<16x16x128xbf16>, vector<16x8x16xf32> -> vector<16x8x16xf32>
    "tpu.trace_stop"() : () -> ()
    %cst_18 = arith.constant dense<0xFF800000> : vector<16x16xf32>
    %28 = vector.multi_reduction <maximumf>, %26, %cst_18 [2] : vector<16x16x8xf32> to vector<16x16xf32>
    %29 = vector.shape_cast %28 : vector<16x16xf32> to vector<16x16x1xf32>
    %30 = vector.broadcast %29 : vector<16x16x1xf32> to vector<16x16x8xf32>
    %31 = arith.subf %26, %30 : vector<16x16x8xf32>
    %32 = math.exp %31 : vector<16x16x8xf32>
    %cst_19 = arith.constant dense<0.000000e+00> : vector<16x16xf32>
    %33 = vector.multi_reduction <add>, %32, %cst_19 [2] : vector<16x16x8xf32> to vector<16x16xf32>
    %34 = vector.shape_cast %33 : vector<16x16xf32> to vector<16x16x1xf32>
    %35 = tpu.reciprocal %34 {approx = true} : vector<16x16x1xf32> -> vector<16x16x1xf32>
    %36 = vector.broadcast %35 : vector<16x16x1xf32> to vector<16x16x8xf32>
    %37 = arith.mulf %32, %36 : vector<16x16x8xf32>
    %38 = arith.truncf %37 : vector<16x16x8xf32> to vector<16x16x8xbf16>
    "tpu.trace_start"() <{level = 10 : i32, message = "bts,bse->bte"}> : () -> ()
    %cst_20 = arith.constant dense<0.000000e+00> : vector<16x16x128xf32>
    %39 = tpu.matmul %38, %1, %cst_20 {dimension_numbers = #tpu.dot_dimension_numbers<[2], [1], [1], [2], [0, 0, 0, 1, 1, 2], [0], [0]>} : vector<16x16x8xbf16>, vector<16x8x128xbf16>, vector<16x16x128xf32> -> vector<16x16x128xf32>
    "tpu.trace_stop"() : () -> ()
    %c0_21 = arith.constant 0 : index
    %c0_22 = arith.constant 0 : index
    %c0_23 = arith.constant 0 : index
    %40 = vector.load %arg7[%c0_21, %c0_22, %c0_23] : memref<16x16x128xf32, #tpu.memory_space<vmem>>, vector<16x16x128xf32>
    tpu.vector_store %arg7[%c0_21, %c0_22, %c0_23], %39 {strides = array<i32>} : memref<16x16x128xf32, #tpu.memory_space<vmem>>, vector<16x16x128xf32>,
    %cst_24 = arith.constant dense<0xFF800000> : vector<16x8xf32>
    %41 = vector.multi_reduction <maximumf>, %27, %cst_24 [2] : vector<16x8x16xf32> to vector<16x8xf32>
    %42 = vector.shape_cast %41 : vector<16x8xf32> to vector<16x8x1xf32>
    %43 = vector.broadcast %42 : vector<16x8x1xf32> to vector<16x8x16xf32>
    %44 = arith.subf %27, %43 : vector<16x8x16xf32>
    %45 = math.exp %44 : vector<16x8x16xf32>
    %cst_25 = arith.constant dense<0.000000e+00> : vector<16x8xf32>
    %46 = vector.multi_reduction <add>, %45, %cst_25 [2] : vector<16x8x16xf32> to vector<16x8xf32>
    %47 = vector.shape_cast %46 : vector<16x8xf32> to vector<16x8x1xf32>
    %48 = tpu.reciprocal %47 {approx = true} : vector<16x8x1xf32> -> vector<16x8x1xf32>
    %49 = vector.broadcast %48 : vector<16x8x1xf32> to vector<16x8x16xf32>
    %50 = arith.mulf %45, %49 : vector<16x8x16xf32>
    %51 = arith.truncf %50 : vector<16x8x16xf32> to vector<16x8x16xbf16>
    "tpu.trace_start"() <{level = 10 : i32, message = "bst,bte->bse"}> : () -> ()
    %cst_26 = arith.constant dense<0.000000e+00> : vector<16x8x128xf32>
    %52 = tpu.matmul %51, %0, %cst_26 {dimension_numbers = #tpu.dot_dimension_numbers<[2], [1], [1], [2], [0, 0, 0, 1, 1, 2], [0], [0]>} : vector<16x8x16xbf16>, vector<16x16x128xbf16>, vector<16x8x128xf32> -> vector<16x8x128xf32>
    "tpu.trace_stop"() : () -> ()
    %c0_27 = arith.constant 0 : index
    %c0_28 = arith.constant 0 : index
    %c0_29 = arith.constant 0 : index
    %53 = vector.load %arg8[%c0_27, %c0_28, %c0_29] : memref<16x8x128xf32, #tpu.memory_space<vmem>>, vector<16x8x128xf32>
    tpu.vector_store %arg8[%c0_27, %c0_28, %c0_29], %52 {strides = array<i32>} : memref<16x8x128xf32, #tpu.memory_space<vmem>>, vector<16x8x128xf32>,
    return
  }
  func.func @transform_0(%arg0: i32) -> (i32, i32, i32) {
    %c0_i32 = arith.constant 0 : i32
    %c0_i32_0 = arith.constant 0 : i32
    %c0_i32_1 = arith.constant 0 : i32
    return %arg0, %c0_i32, %c0_i32_0 : i32, i32, i32
  }
  func.func @transform_1(%arg0: i32) -> (i32, i32, i32) {
    %c0_i32 = arith.constant 0 : i32
    %c0_i32_0 = arith.constant 0 : i32
    %c0_i32_1 = arith.constant 0 : i32
    return %arg0, %c0_i32, %c0_i32_0 : i32, i32, i32
  }
  func.func @transform_2(%arg0: i32) -> (i32, i32) {
    %c0_i32 = arith.constant 0 : i32
    %c0_i32_0 = arith.constant 0 : i32
    %c0_i32_1 = arith.constant 0 : i32
    return %c0_i32, %c0_i32_0 : i32, i32
  }
  func.func @transform_3(%arg0: i32) -> (i32, i32) {
    %c0_i32 = arith.constant 0 : i32
    %c0_i32_0 = arith.constant 0 : i32
    %c0_i32_1 = arith.constant 0 : i32
    return %c0_i32, %c0_i32_0 : i32, i32
  }
  func.func @transform_4(%arg0: i32) -> (i32, i32) {
    %c0_i32 = arith.constant 0 : i32
    %c0_i32_0 = arith.constant 0 : i32
    %c0_i32_1 = arith.constant 0 : i32
    return %c0_i32, %c0_i32_0 : i32, i32
  }
  func.func @transform_5(%arg0: i32) -> (i32, i32) {
    %c0_i32 = arith.constant 0 : i32
    %c0_i32_0 = arith.constant 0 : i32
    %c0_i32_1 = arith.constant 0 : i32
    return %c0_i32, %c0_i32_0 : i32, i32
  }
  func.func @transform_6(%arg0: i32) -> (i32, i32, i32) {
    %c0_i32 = arith.constant 0 : i32
    %c0_i32_0 = arith.constant 0 : i32
    %c0_i32_1 = arith.constant 0 : i32
    return %arg0, %c0_i32, %c0_i32_0 : i32, i32, i32
  }
  func.func @transform_7(%arg0: i32) -> (i32, i32, i32) {
    %c0_i32 = arith.constant 0 : i32
    %c0_i32_0 = arith.constant 0 : i32
    %c0_i32_1 = arith.constant 0 : i32
    return %arg0, %c0_i32, %c0_i32_0 : i32, i32, i32
  }
}

</mosaic_0001>

<llo_original>
// kernel: tpu_custom_call.1
$region0: #{tpu_custom_call.1}
  #allocation0 [shape = 'u32[]', space=smem, size = 0x4, offset = 0x4, fixed_abs, tag = 'smem constant byte address 0x4 - core index']
  #allocation1 [shape = 'u32[72,128]{1,0:T(1,128)}', space=vmem, size = 0x9000, scoped, tag = 'internal scratch']
  %s0 = inlined_call_operand.hbm [shape: bf16[32,16,128], index: 0, kind: input, shape index: {}]
  %s1 = inlined_call_operand.hbm [shape: bf16[32,8,128], index: 1, kind: input, shape index: {}]
  %s2 = inlined_call_operand.hbm [shape: bf16[128,128], index: 2, kind: input, shape index: {}]
  %s3 = inlined_call_operand.vmem [shape: f32[1,128], index: 3, kind: input, shape index: {}]
  %s4 = inlined_call_operand.hbm [shape: bf16[128,128], index: 4, kind: input, shape index: {}]
  %s5 = inlined_call_operand.vmem [shape: f32[1,128], index: 5, kind: input, shape index: {}]
  %s6 = inlined_call_operand.hbm [shape: f32[32,16,128], index: 6, kind: output, shape index: {0}]
  %s7 = inlined_call_operand.hbm [shape: f32[32,8,128], index: 7, kind: output, shape index: {1}]
  %8 = xla_tuple %s6, %s7
  %s9 = sld [smem:[#allocation0]]
  $region81: #{tpu_custom_call.1} parent=0
    _
  %s11 = ssub.s32 1, %s9
  %s12 = scalar_select 0, %s11, %s9
  $region1: #{tpu_custom_call.1} parent=0
    #allocation2 [shape = 'u8[131072]{0}', space=vmem, size = 0x20000, scoped, tag = 'input window, operand 0']
    #allocation3 [shape = 's32[2]{0}', space=sflag, size = 0x8, scoped, tag = 'scoped memory for tpu_custom_call.1']
    #allocation4 [shape = 's32[2]{0}', space=sflag, size = 0x8, scoped, tag = 'scoped memory for tpu_custom_call.1']
    #allocation5 [shape = 'u8[65536]{0}', space=vmem, size = 0x10000, scoped, tag = 'input window, operand 1']
    #allocation6 [shape = 's32[2]{0}', space=sflag, size = 0x8, scoped, tag = 'scoped memory for tpu_custom_call.1']
    #allocation7 [shape = 'u8[32768]{0}', space=vmem, size = 0x8000, scoped, tag = 'input window, operand 2, single buffered']
    #allocation8 [shape = 'u8[32768]{0}', space=vmem, size = 0x8000, scoped, tag = 'input window, operand 4, single buffered']
    #allocation9 [shape = 's32[1]{0}', space=sflag, size = 0x4, scoped, tag = 'scoped memory for tpu_custom_call.1']
    #allocation10 [shape = 'u8[262144]{0}', space=vmem, size = 0x40000, scoped, tag = 'output window, operand 0']
    #allocation11 [shape = 'u8[131072]{0}', space=vmem, size = 0x20000, scoped, tag = 'output window, operand 1']
    #allocation12 [shape = 's32[2]{0}', space=sflag, size = 0x8, scoped, tag = 'scoped memory for tpu_custom_call.1']
    %13 = vsyncpa [#allocation3], 0
    %s14 = scalar_lea.sflag [#allocation3], 1
    %15 = vsyncpa %s14, 0
    %16 = vsyncpa [#allocation6], 0
    %s17 = scalar_lea.sflag [#allocation6], 1
    %18 = vsyncpa %s17, 0
    %19 = vsyncpa [#allocation9], 0
    %20 = vsyncpa [#allocation4], 0
    %s21 = scalar_lea.sflag [#allocation4], 1
    %22 = vsyncpa %s21, 0
    %23 = vsyncpa [#allocation12], 0
    %s24 = scalar_lea.sflag [#allocation12], 1
    %25 = vsyncpa %s24, 0
    loop: start=0, step=1, limit=4
    $region2: #{tpu_custom_call.1} parent=1 // loop_pre_header
      _
    $region3: #{tpu_custom_call.1} parent=1 // loop_header
      %s27 = sphi 0, %s31
      %p28 = scmp.ge.s32.totalorder %s27, 4
      %s37 = sphi 0, %s39
      %s40 = sphi 0, %s37
      %s41 = sphi 0, %s40
      %s57 = sphi 0, %s41
      %s63 = sphi 0, %s65
      %s66 = sphi 0, %s63
      %s67 = sphi 0, %s66
      %s83 = sphi 0, %s67
      %s87 = sphi 0, %s87
      %s89 = sphi 0, %s87
      %s90 = sphi 0, %s89
      %s104 = sphi 0, %s90
      %s108 = sphi 0, %s108
      %s110 = sphi 0, %s108
      %s111 = sphi 0, %s110
      %s125 = sphi 0, %s111
      %s129 = sphi 0, %s129
      %s131 = sphi 0, %s129
      %s132 = sphi 0, %s131
      %s146 = sphi 0, %s132
      %s150 = sphi 0, %s150
      %s152 = sphi 0, %s150
      %s153 = sphi 0, %s152
      %s167 = sphi 0, %s153
      %s173 = sphi 0, %s175
      %s176 = sphi 0, %s173
      %s177 = sphi 0, %s176
      %s193 = sphi 0, %s177
      %s199 = sphi 0, %s201
      %s202 = sphi 0, %s199
      %s203 = sphi 0, %s202
      %s219 = sphi 0, %s203
    $region4: #{tpu_custom_call.1} parent=1 // loop_header_branch
      %30 = sbr.rel (%p28) target = $region8
    $region5: #{tpu_custom_call.1} parent=1 // loop_body
      %s32 = ssub.s32 %s27, 1
      %s33 = ssub.s32 %s27, 2
      %s34 = sadd.s32 %s27, 1
      %s35 = ssub.s32 %s27, %s34
      %p36 = scmp.eq.s32.totalorder %s35, 0
      %s38 = sadd.s32 %s37, 1
      %s39 = scalar_select %p36, %s37, %s38
      %p42 = pneg %p36
      %p43 = scmp.eq.s32.totalorder %s27, 1
      %p44 = por %p42, %p43
      %p45 = scmp.ne.s32.totalorder %s37, %s40
      %p46 = scmp.eq.s32.totalorder %s27, 0
      %p47 = por %p45, %p46
      %p48 = scmp.ne.s32.totalorder %s37, %s40
      %p49 = scmp.eq.s32.totalorder %s32, 1
      %p50 = por %p48, %p49
      %p51 = scmp.ne.s32.totalorder %s40, %s41
      %p52 = scmp.eq.s32.totalorder %s32, 0
      %p53 = por %p51, %p52
      %p54 = scmp.ne.s32.totalorder %s40, %s41
      %p55 = scmp.eq.s32.totalorder %s33, 1
      %p56 = por %p54, %p55
      %p58 = scmp.ne.s32.totalorder %s41, %s57
      %p59 = scmp.eq.s32.totalorder %s33, 0
      %p60 = por %p58, %p59
      %s61 = ssub.s32 %s27, %s34
      %p62 = scmp.eq.s32.totalorder %s61, 0
      %s64 = sadd.s32 %s63, 1
      %s65 = scalar_select %p62, %s63, %s64
      %p68 = pneg %p62
      %p69 = scmp.eq.s32.totalorder %s27, 1
      %p70 = por %p68, %p69
      %p71 = scmp.ne.s32.totalorder %s63, %s66
      %p72 = scmp.eq.s32.totalorder %s27, 0
      %p73 = por %p71, %p72
      %p74 = scmp.ne.s32.totalorder %s63, %s66
      %p75 = scmp.eq.s32.totalorder %s32, 1
      %p76 = por %p74, %p75
      %p77 = scmp.ne.s32.totalorder %s66, %s67
      %p78 = scmp.eq.s32.totalorder %s32, 0
      %p79 = por %p77, %p78
      %p80 = scmp.ne.s32.totalorder %s66, %s67
      %p81 = scmp.eq.s32.totalorder %s33, 1
      %p82 = por %p80, %p81
      %p84 = scmp.ne.s32.totalorder %s67, %s83
      %p85 = scmp.eq.s32.totalorder %s33, 0
      %p86 = por %p84, %p85
      %s88 = sadd.s32 %s87, 1
      %p91 = scmp.eq.s32.totalorder %s27, 1
      %p92 = scmp.ne.s32.totalorder %s87, %s89
      %p93 = scmp.eq.s32.totalorder %s27, 0
      %p94 = por %p92, %p93
      %p95 = scmp.ne.s32.totalorder %s87, %s89
      %p96 = scmp.eq.s32.totalorder %s32, 1
      %p97 = por %p95, %p96
      %p98 = scmp.ne.s32.totalorder %s89, %s90
      %p99 = scmp.eq.s32.totalorder %s32, 0
      %p100 = por %p98, %p99
      %p101 = scmp.ne.s32.totalorder %s89, %s90
      %p102 = scmp.eq.s32.totalorder %s33, 1
      %p103 = por %p101, %p102
      %p105 = scmp.ne.s32.totalorder %s90, %s104
      %p106 = scmp.eq.s32.totalorder %s33, 0
      %p107 = por %p105, %p106
      %s109 = sadd.s32 %s108, 1
      %p112 = scmp.eq.s32.totalorder %s27, 1
      %p113 = scmp.ne.s32.totalorder %s108, %s110
      %p114 = scmp.eq.s32.totalorder %s27, 0
      %p115 = por %p113, %p114
      %p116 = scmp.ne.s32.totalorder %s108, %s110
      %p117 = scmp.eq.s32.totalorder %s32, 1
      %p118 = por %p116, %p117
      %p119 = scmp.ne.s32.totalorder %s110, %s111
      %p120 = scmp.eq.s32.totalorder %s32, 0
      %p121 = por %p119, %p120
      %p122 = scmp.ne.s32.totalorder %s110, %s111
      %p123 = scmp.eq.s32.totalorder %s33, 1
      %p124 = por %p122, %p123
      %p126 = scmp.ne.s32.totalorder %s111, %s125
      %p127 = scmp.eq.s32.totalorder %s33, 0
      %p128 = por %p126, %p127
      %s130 = sadd.s32 %s129, 1
      %p133 = scmp.eq.s32.totalorder %s27, 1
      %p134 = scmp.ne.s32.totalorder %s129, %s131
      %p135 = scmp.eq.s32.totalorder %s27, 0
      %p136 = por %p134, %p135
      %p137 = scmp.ne.s32.totalorder %s129, %s131
      %p138 = scmp.eq.s32.totalorder %s32, 1
      %p139 = por %p137, %p138
      %p140 = scmp.ne.s32.totalorder %s131, %s132
      %p141 = scmp.eq.s32.totalorder %s32, 0
      %p142 = por %p140, %p141
      %p143 = scmp.ne.s32.totalorder %s131, %s132
      %p144 = scmp.eq.s32.totalorder %s33, 1
      %p145 = por %p143, %p144
      %p147 = scmp.ne.s32.totalorder %s132, %s146
      %p148 = scmp.eq.s32.totalorder %s33, 0
      %p149 = por %p147, %p148
      %s151 = sadd.s32 %s150, 1
      %p154 = scmp.eq.s32.totalorder %s27, 1
      %p155 = scmp.ne.s32.totalorder %s150, %s152
      %p156 = scmp.eq.s32.totalorder %s27, 0
      %p157 = por %p155, %p156
      %p158 = scmp.ne.s32.totalorder %s150, %s152
      %p159 = scmp.eq.s32.totalorder %s32, 1
      %p160 = por %p158, %p159
      %p161 = scmp.ne.s32.totalorder %s152, %s153
      %p162 = scmp.eq.s32.totalorder %s32, 0
      %p163 = por %p161, %p162
      %p164 = scmp.ne.s32.totalorder %s152, %s153
      %p165 = scmp.eq.s32.totalorder %s33, 1
      %p166 = por %p164, %p165
      %p168 = scmp.ne.s32.totalorder %s153, %s167
      %p169 = scmp.eq.s32.totalorder %s33, 0
      %p170 = por %p168, %p169
      %s171 = ssub.s32 %s27, %s34
      %p172 = scmp.eq.s32.totalorder %s171, 0
      %s174 = sadd.s32 %s173, 1
      %s175 = scalar_select %p172, %s173, %s174
      %p178 = pneg %p172
      %p179 = scmp.eq.s32.totalorder %s27, 1
      %p180 = por %p178, %p179
      %p181 = scmp.ne.s32.totalorder %s173, %s176
      %p182 = scmp.eq.s32.totalorder %s27, 0
      %p183 = por %p181, %p182
      %p184 = scmp.ne.s32.totalorder %s173, %s176
      %p185 = scmp.eq.s32.totalorder %s32, 1
      %p186 = por %p184, %p185
      %p187 = scmp.ne.s32.totalorder %s176, %s177
      %p188 = scmp.eq.s32.totalorder %s32, 0
      %p189 = por %p187, %p188
      %p190 = scmp.ne.s32.totalorder %s176, %s177
      %p191 = scmp.eq.s32.totalorder %s33, 1
      %p192 = por %p190, %p191
      %p194 = scmp.ne.s32.totalorder %s177, %s193
      %p195 = scmp.eq.s32.totalorder %s33, 0
      %p196 = por %p194, %p195
      %s197 = ssub.s32 %s27, %s34
      %p198 = scmp.eq.s32.totalorder %s197, 0
      %s200 = sadd.s32 %s199, 1
      %s201 = scalar_select %p198, %s199, %s200
      %p204 = pneg %p198
      %p205 = scmp.eq.s32.totalorder %s27, 1
      %p206 = por %p204, %p205
      %p207 = scmp.ne.s32.totalorder %s199, %s202
      %p208 = scmp.eq.s32.totalorder %s27, 0
      %p209 = por %p207, %p208
      %p210 = scmp.ne.s32.totalorder %s199, %s202
      %p211 = scmp.eq.s32.totalorder %s32, 1
      %p212 = por %p210, %p211
      %p213 = scmp.ne.s32.totalorder %s202, %s203
      %p214 = scmp.eq.s32.totalorder %s32, 0
      %p215 = por %p213, %p214
      %p216 = scmp.ne.s32.totalorder %s202, %s203
      %p217 = scmp.eq.s32.totalorder %s33, 1
      %p218 = por %p216, %p217
      %p220 = scmp.ne.s32.totalorder %s203, %s219
      %p221 = scmp.eq.s32.totalorder %s33, 0
      %p222 = por %p220, %p221
      %p223 = scmp.le.s32.totalorder 1, %s27
      %p224 = scmp.lt.s32.totalorder %s27, 3
      %p225 = pnand %p223, %p224
      %p226 = pneg %p225
      // Predicated region
      $region9: #{tpu_custom_call.1} parent=5 // pred_check
        _
      $region10: #{tpu_custom_call.1} parent=5 // pred_check_branch
        %228 = sbr.rel (%p225) target = $region12
      $region11: #{tpu_custom_call.1} parent=5 // pred_region
        %s229 = ssub.s32 %s27, 1
        // Predicated region
        $region13: #{tpu_custom_call.1} parent=11 // pred_check
          %p230 = pneg %p100
        $region14: #{tpu_custom_call.1} parent=11 // pred_check_branch
          %232 = sbr.rel (%p230) target = $region16
        $region15: #{tpu_custom_call.1} parent=11 // pred_region
          %234 = vsyncadd [#allocation6], 0
          %s235 = sshll.u32 %s2, 4
          %s236 = int_to_ptr.hbm [resolvable:$true] %s235
          %s237 = sshll.u32 [#allocation7], 4
          %s238 = int_to_ptr.vmem [resolvable:$true] %s237
          %243 = dma.hbm_to_vmem [thread:$0]  %s236, 1024, %s238, [#allocation6], 64, 64, 4
        $region16: #{tpu_custom_call.1} parent=11 // pred_fallthru
          _
        // Predicated region
        $region17: #{tpu_custom_call.1} parent=11 // pred_check
          %p244 = pneg %p121
        $region18: #{tpu_custom_call.1} parent=11 // pred_check_branch
          %246 = sbr.rel (%p244) target = $region20
        $region19: #{tpu_custom_call.1} parent=11 // pred_region
          _
        $region20: #{tpu_custom_call.1} parent=11 // pred_fallthru
          _
        // Predicated region
        $region21: #{tpu_custom_call.1} parent=11 // pred_check
          %p247 = pneg %p142
        $region22: #{tpu_custom_call.1} parent=11 // pred_check_branch
          %249 = sbr.rel (%p247) target = $region24
        $region23: #{tpu_custom_call.1} parent=11 // pred_region
          %251 = vsyncadd [#allocation9], 0
          %s252 = sshll.u32 %s4, 4
          %s253 = int_to_ptr.hbm [resolvable:$true] %s252
          %s254 = sshll.u32 [#allocation8], 4
          %s255 = int_to_ptr.vmem [resolvable:$true] %s254
          %260 = dma.hbm_to_vmem [thread:$0]  %s253, 1024, %s255, [#allocation9], 64, 64, 4
        $region24: #{tpu_custom_call.1} parent=11 // pred_fallthru
          _
        // Predicated region
        $region25: #{tpu_custom_call.1} parent=11 // pred_check
          %p261 = pneg %p163
        $region26: #{tpu_custom_call.1} parent=11 // pred_check_branch
          %263 = sbr.rel (%p261) target = $region28
        $region27: #{tpu_custom_call.1} parent=11 // pred_region
          _
        $region28: #{tpu_custom_call.1} parent=11 // pred_fallthru
          _
      $region12: #{tpu_custom_call.1} parent=5 // pred_fallthru
        _
      %p264 = scmp.lt.s32.totalorder %s27, 2
      // Predicated region
      $region29: #{tpu_custom_call.1} parent=5 // pred_check
        %p265 = pneg %p264
      $region30: #{tpu_custom_call.1} parent=5 // pred_check_branch
        %267 = sbr.rel (%p265) target = $region32
      $region31: #{tpu_custom_call.1} parent=5 // pred_region
        // Predicated region
        $region33: #{tpu_custom_call.1} parent=31 // pred_check
          %p268 = pneg %p47
        $region34: #{tpu_custom_call.1} parent=31 // pred_check_branch
          %270 = sbr.rel (%p268) target = $region36
        $region35: #{tpu_custom_call.1} parent=31 // pred_region
          %s271 = sand.u32 %s37, 1
          %s272 = scalar_lea.sflag [#allocation3], %s271
          %s273 = sand.u32 %s37, 1
          %s274 = smul.addr %s273, 128
          %s275 = scalar_lea.vmem [#allocation2], %s274
          %s276 = smul.u32 16, %s27
          %278 = vsyncadd %s272, 0
          %s279 = smul.addr %s276, 2
          %s280 = smul.addr %s279, 4
          %s281 = scalar_lea.hbm %s0, %s280
          %s282 = sshll.u32 %s281, 4
          %s283 = int_to_ptr.hbm [resolvable:$true] %s282
          %s284 = sshll.u32 %s275, 4
          %s285 = int_to_ptr.vmem [resolvable:$true] %s284
          %290 = dma.hbm_to_vmem [thread:$0]  %s283, 2048, %s285, %s272, 64, 64, 4
        $region36: #{tpu_custom_call.1} parent=31 // pred_fallthru
          _
        // Predicated region
        $region37: #{tpu_custom_call.1} parent=31 // pred_check
          %p291 = pneg %p73
        $region38: #{tpu_custom_call.1} parent=31 // pred_check_branch
          %293 = sbr.rel (%p291) target = $region40
        $region39: #{tpu_custom_call.1} parent=31 // pred_region
          %s294 = sand.u32 %s27, 1
          %s295 = scalar_lea.sflag [#allocation6], %s294
          %s296 = sand.u32 %s63, 1
          %s297 = smul.addr %s296, 64
          %s298 = scalar_lea.vmem [#allocation5], %s297
          %s299 = smul.u32 16, %s27
          %301 = vsyncadd %s295, 0
          %s302 = smul.addr %s299, 4
          %s303 = scalar_lea.hbm %s1, %s302
          %s304 = sshll.u32 %s303, 4
          %s305 = int_to_ptr.hbm [resolvable:$true] %s304
          %s306 = sshll.u32 %s298, 4
          %s307 = int_to_ptr.vmem [resolvable:$true] %s306
          %312 = dma.hbm_to_vmem [thread:$0]  %s305, 1024, %s307, %s295, 64, 64, 4
        $region40: #{tpu_custom_call.1} parent=31 // pred_fallthru
          _
      $region32: #{tpu_custom_call.1} parent=5 // pred_fallthru
        _
      %p313 = scmp.le.s32.totalorder 1, %s27
      %p314 = scmp.lt.s32.totalorder %s27, 3
      %p315 = pnand %p313, %p314
      %p316 = pneg %p315
      // Predicated region
      $region41: #{tpu_custom_call.1} parent=5 // pred_check
        _
      $region42: #{tpu_custom_call.1} parent=5 // pred_check_branch
        %318 = sbr.rel (%p315) target = $region44
      $region43: #{tpu_custom_call.1} parent=5 // pred_region
        %s319 = ssub.s32 %s27, 1
        %s320 = sand.u32 %s40, 1
        %s321 = scalar_lea.sflag [#allocation3], %s320
        %s322 = sand.u32 %s40, 1
        %s323 = smul.addr %s322, 128
        %s324 = scalar_lea.vmem [#allocation2], %s323
        // Predicated region
        $region45: #{tpu_custom_call.1} parent=43 // pred_check
          %p325 = pneg %p53
        $region46: #{tpu_custom_call.1} parent=43 // pred_check_branch
          %327 = sbr.rel (%p325) target = $region48
        $region47: #{tpu_custom_call.1} parent=43 // pred_region
          %329 = dma.done %s321, 2048
        $region48: #{tpu_custom_call.1} parent=43 // pred_fallthru
          _
        %s330 = sand.u32 %s32, 1
        %s331 = scalar_lea.sflag [#allocation6], %s330
        %s332 = sand.u32 %s66, 1
        %s333 = smul.addr %s332, 64
        %s334 = scalar_lea.vmem [#allocation5], %s333
        // Predicated region
        $region49: #{tpu_custom_call.1} parent=43 // pred_check
          %p335 = pneg %p79
        $region50: #{tpu_custom_call.1} parent=43 // pred_check_branch
          %337 = sbr.rel (%p335) target = $region52
        $region51: #{tpu_custom_call.1} parent=43 // pred_region
          %339 = dma.done %s331, 1024
        $region52: #{tpu_custom_call.1} parent=43 // pred_fallthru
          _
        // Predicated region
        $region53: #{tpu_custom_call.1} parent=43 // pred_check
          %p340 = pneg %p100
        $region54: #{tpu_custom_call.1} parent=43 // pred_check_branch
          %342 = sbr.rel (%p340) target = $region56
        $region55: #{tpu_custom_call.1} parent=43 // pred_region
          %344 = dma.done [#allocation6], 1024
        $region56: #{tpu_custom_call.1} parent=43 // pred_fallthru
          _
        // Predicated region
        $region57: #{tpu_custom_call.1} parent=43 // pred_check
          %p345 = pneg %p142
        $region58: #{tpu_custom_call.1} parent=43 // pred_check_branch
          %347 = sbr.rel (%p345) target = $region60
        $region59: #{tpu_custom_call.1} parent=43 // pred_region
          %349 = dma.done [#allocation9], 1024
        $region60: #{tpu_custom_call.1} parent=43 // pred_fallthru
          _
        %s350 = sand.u32 %s40, 1
        %s351 = scalar_lea.sflag [#allocation3], %s350
        %s352 = sand.u32 %s40, 1
        %s353 = smul.addr %s352, 128
        %s354 = scalar_lea.vmem [#allocation2], %s353
        %p355 = pneg %p53
        %p356 = pneg %p50
        %s357 = sand.u32 %s32, 1
        %s358 = scalar_lea.sflag [#allocation6], %s357
        %s359 = sand.u32 %s66, 1
        %s360 = smul.addr %s359, 64
        %s361 = scalar_lea.vmem [#allocation5], %s360
        %p362 = pneg %p79
        %p363 = pneg %p76
        %p364 = pneg %p100
        %p365 = pneg %p97
        %p366 = pneg %p121
        %p367 = pneg %p118
        %p368 = pneg %p142
        %p369 = pneg %p139
        %p370 = pneg %p163
        %p371 = pneg %p160
        %p372 = pneg %p189
        %p373 = pneg %p186
        %s374 = sand.u32 %s176, 1
        %s375 = scalar_lea.sflag [#allocation4], %s374
        %s376 = sand.u32 %s176, 1
        %s377 = smul.addr %s376, 256
        %s378 = scalar_lea.vmem [#allocation10], %s377
        %p379 = pneg %p215
        %p380 = pneg %p212
        %s381 = sand.u32 %s202, 1
        %s382 = scalar_lea.sflag [#allocation12], %s381
        %s383 = sand.u32 %s202, 1
        %s384 = smul.addr %s383, 128
        %s385 = scalar_lea.vmem [#allocation11], %s384
        %s386 = smul.u32 16, %s32
        %s387 = smul.u32 16, %s32
        %s388 = smul.u32 16, %s32
        %s389 = smul.u32 16, %s32
        %v391 = vld [vmem:[%s324] sm:$0xf]
        %v392 = vld [vmem:[%s324 + $0x4] sm:$0xf]
        %v393 = vld [vmem:[%s324 + $0x8] sm:$0xf]
        %v394 = vld [vmem:[%s324 + $0xc] sm:$0xf]
        %v395 = vld [vmem:[%s324 + $0x10] sm:$0xf]
        %v396 = vld [vmem:[%s324 + $0x14] sm:$0xf]
        %v397 = vld [vmem:[%s324 + $0x18] sm:$0xf]
        %v398 = vld [vmem:[%s324 + $0x1c] sm:$0xf]
        %v399 = vld [vmem:[%s324 + $0x20] sm:$0xf]
        %v400 = vld [vmem:[%s324 + $0x24] sm:$0xf]
        %v401 = vld [vmem:[%s324 + $0x28] sm:$0xf]
        %v402 = vld [vmem:[%s324 + $0x2c] sm:$0xf]
        %v403 = vld [vmem:[%s324 + $0x30] sm:$0xf]
        %v404 = vld [vmem:[%s324 + $0x34] sm:$0xf]
        %v405 = vld [vmem:[%s324 + $0x38] sm:$0xf]
        %v406 = vld [vmem:[%s324 + $0x3c] sm:$0xf]
        %v407 = vld [vmem:[%s324 + $0x40] sm:$0xf]
        %v408 = vld [vmem:[%s324 + $0x44] sm:$0xf]
        %v409 = vld [vmem:[%s324 + $0x48] sm:$0xf]
        %v410 = vld [vmem:[%s324 + $0x4c] sm:$0xf]
        %v411 = vld [vmem:[%s324 + $0x50] sm:$0xf]
        %v412 = vld [vmem:[%s324 + $0x54] sm:$0xf]
        %v413 = vld [vmem:[%s324 + $0x58] sm:$0xf]
        %v414 = vld [vmem:[%s324 + $0x5c] sm:$0xf]
        %v415 = vld [vmem:[%s324 + $0x60] sm:$0xf]
        %v416 = vld [vmem:[%s324 + $0x64] sm:$0xf]
        %v417 = vld [vmem:[%s324 + $0x68] sm:$0xf]
        %v418 = vld [vmem:[%s324 + $0x6c] sm:$0xf]
        %v419 = vld [vmem:[%s324 + $0x70] sm:$0xf]
        %v420 = vld [vmem:[%s324 + $0x74] sm:$0xf]
        %v421 = vld [vmem:[%s324 + $0x78] sm:$0xf]
        %v422 = vld [vmem:[%s324 + $0x7c] sm:$0xf]
        %v423 = vld [vmem:[%s334] sm:$0xf]
        %v424 = vld [vmem:[%s334 + $0x4] sm:$0xf]
        %v425 = vld [vmem:[%s334 + $0x8] sm:$0xf]
        %v426 = vld [vmem:[%s334 + $0xc] sm:$0xf]
        %v427 = vld [vmem:[%s334 + $0x10] sm:$0xf]
        %v428 = vld [vmem:[%s334 + $0x14] sm:$0xf]
        %v429 = vld [vmem:[%s334 + $0x18] sm:$0xf]
        %v430 = vld [vmem:[%s334 + $0x1c] sm:$0xf]
        %v431 = vld [vmem:[%s334 + $0x20] sm:$0xf]
        %v432 = vld [vmem:[%s334 + $0x24] sm:$0xf]
        %v433 = vld [vmem:[%s334 + $0x28] sm:$0xf]
        %v434 = vld [vmem:[%s334 + $0x2c] sm:$0xf]
        %v435 = vld [vmem:[%s334 + $0x30] sm:$0xf]
        %v436 = vld [vmem:[%s334 + $0x34] sm:$0xf]
        %v437 = vld [vmem:[%s334 + $0x38] sm:$0xf]
        %v438 = vld [vmem:[%s334 + $0x3c] sm:$0xf]
        %v439 = vld [vmem:[#allocation7] sm:$0xf]
        %v440 = vld [vmem:[#allocation7 + $0x4] sm:$0xf]
        %v441 = vld [vmem:[#allocation7 + $0x8] sm:$0xf]
        %v442 = vld [vmem:[#allocation7 + $0xc] sm:$0xf]
        %v443 = vld [vmem:[#allocation7 + $0x10] sm:$0xf]
        %v444 = vld [vmem:[#allocation7 + $0x14] sm:$0xf]
        %v445 = vld [vmem:[#allocation7 + $0x18] sm:$0xf]
        %v446 = vld [vmem:[#allocation7 + $0x1c] sm:$0xf]
        %v447 = vld [vmem:[#allocation7 + $0x20] sm:$0xf]
        %v448 = vld [vmem:[#allocation7 + $0x24] sm:$0xf]
        %v449 = vld [vmem:[#allocation7 + $0x28] sm:$0xf]
        %v450 = vld [vmem:[#allocation7 + $0x2c] sm:$0xf]
        %v451 = vld [vmem:[#allocation7 + $0x30] sm:$0xf]
        %v452 = vld [vmem:[#allocation7 + $0x34] sm:$0xf]
        %v453 = vld [vmem:[#allocation7 + $0x38] sm:$0xf]
        %v454 = vld [vmem:[#allocation7 + $0x3c] sm:$0xf]
        %v455 = vld [vmem:[#allocation8] sm:$0xf]
        %v456 = vld [vmem:[#allocation8 + $0x4] sm:$0xf]
        %v457 = vld [vmem:[#allocation8 + $0x8] sm:$0xf]
        %v458 = vld [vmem:[#allocation8 + $0xc] sm:$0xf]
        %v459 = vld [vmem:[#allocation8 + $0x10] sm:$0xf]
        %v460 = vld [vmem:[#allocation8 + $0x14] sm:$0xf]
        %v461 = vld [vmem:[#allocation8 + $0x18] sm:$0xf]
        %v462 = vld [vmem:[#allocation8 + $0x1c] sm:$0xf]
        %v463 = vld [vmem:[#allocation8 + $0x20] sm:$0xf]
        %v464 = vld [vmem:[#allocation8 + $0x24] sm:$0xf]
        %v465 = vld [vmem:[#allocation8 + $0x28] sm:$0xf]
        %v466 = vld [vmem:[#allocation8 + $0x2c] sm:$0xf]
        %v467 = vld [vmem:[#allocation8 + $0x30] sm:$0xf]
        %v468 = vld [vmem:[#allocation8 + $0x34] sm:$0xf]
        %v469 = vld [vmem:[#allocation8 + $0x38] sm:$0xf]
        %v470 = vld [vmem:[#allocation8 + $0x3c] sm:$0xf]
        %v471 = vld [vmem:[%s3] sm:$0x1]
        %v472 = vld [vmem:[%s5] sm:$0x1]
        %v505 = vunpack.c.l.b16 %v391
        %v506 = vunpack.c.l.b16 %v392
        %v507 = vunpack.c.l.b16 %v393
        %v508 = vunpack.c.l.b16 %v394
        %v509 = vunpack.c.l.b16 %v395
        %v510 = vunpack.c.l.b16 %v396
        %v511 = vunpack.c.l.b16 %v397
        %v512 = vunpack.c.l.b16 %v398
        %v513 = vunpack.c.l.b16 %v399
        %v514 = vunpack.c.l.b16 %v400
        %v515 = vunpack.c.l.b16 %v401
        %v516 = vunpack.c.l.b16 %v402
        %v517 = vunpack.c.l.b16 %v403
        %v518 = vunpack.c.l.b16 %v404
        %v519 = vunpack.c.l.b16 %v405
        %v520 = vunpack.c.l.b16 %v406
        %v521 = vunpack.c.l.b16 %v407
        %v522 = vunpack.c.l.b16 %v408
        %v523 = vunpack.c.l.b16 %v409
        %v524 = vunpack.c.l.b16 %v410
        %v525 = vunpack.c.l.b16 %v411
        %v526 = vunpack.c.l.b16 %v412
        %v527 = vunpack.c.l.b16 %v413
        %v528 = vunpack.c.l.b16 %v414
        %v529 = vunpack.c.l.b16 %v415
        %v530 = vunpack.c.l.b16 %v416
        %v531 = vunpack.c.l.b16 %v417
        %v532 = vunpack.c.l.b16 %v418
        %v533 = vunpack.c.l.b16 %v419
        %v534 = vunpack.c.l.b16 %v420
        %v535 = vunpack.c.l.b16 %v421
        %v536 = vunpack.c.l.b16 %v422
        %v537 = vpack.c.b16 %v506, %v505
        %v538 = vpack.c.b16 %v508, %v507
        %v539 = vpack.c.b16 %v510, %v509
        %v540 = vpack.c.b16 %v512, %v511
        %v541 = vpack.c.b16 %v514, %v513
        %v542 = vpack.c.b16 %v516, %v515
        %v543 = vpack.c.b16 %v518, %v517
        %v544 = vpack.c.b16 %v520, %v519
        %v545 = vpack.c.b16 %v522, %v521
        %v546 = vpack.c.b16 %v524, %v523
        %v547 = vpack.c.b16 %v526, %v525
        %v548 = vpack.c.b16 %v528, %v527
        %v549 = vpack.c.b16 %v530, %v529
        %v550 = vpack.c.b16 %v532, %v531
        %v551 = vpack.c.b16 %v534, %v533
        %v552 = vpack.c.b16 %v536, %v535
        %v585 = vunpack.c.l.b16 %v423
        %v586 = vunpack.c.l.b16 %v424
        %v587 = vunpack.c.l.b16 %v425
        %v588 = vunpack.c.l.b16 %v426
        %v589 = vunpack.c.l.b16 %v427
        %v590 = vunpack.c.l.b16 %v428
        %v591 = vunpack.c.l.b16 %v429
        %v592 = vunpack.c.l.b16 %v430
        %v593 = vunpack.c.l.b16 %v431
        %v594 = vunpack.c.l.b16 %v432
        %v595 = vunpack.c.l.b16 %v433
        %v596 = vunpack.c.l.b16 %v434
        %v597 = vunpack.c.l.b16 %v435
        %v598 = vunpack.c.l.b16 %v436
        %v599 = vunpack.c.l.b16 %v437
        %v600 = vunpack.c.l.b16 %v438
        %v601 = vpack.c.b16 %v586, %v585
        %v602 = vpack.c.b16 %v588, %v587
        %v603 = vpack.c.b16 %v590, %v589
        %v604 = vpack.c.b16 %v592, %v591
        %v605 = vpack.c.b16 %v594, %v593
        %v606 = vpack.c.b16 %v596, %v595
        %v607 = vpack.c.b16 %v598, %v597
        %v608 = vpack.c.b16 %v600, %v599
        %v618 = vperm.slane %v471, 0
        %v636 = vunpack.c.l.b16 %v439
        %v637 = vunpack.c.l.b16 %v440
        %v638 = vunpack.c.l.b16 %v441
        %v639 = vunpack.c.l.b16 %v442
        %v640 = vunpack.c.l.b16 %v443
        %v641 = vunpack.c.l.b16 %v444
        %v642 = vunpack.c.l.b16 %v445
        %v643 = vunpack.c.l.b16 %v446
        %v644 = vunpack.c.l.b16 %v447
        %v645 = vunpack.c.l.b16 %v448
        %v646 = vunpack.c.l.b16 %v449
        %v647 = vunpack.c.l.b16 %v450
        %v648 = vunpack.c.l.b16 %v451
        %v649 = vunpack.c.l.b16 %v452
        %v650 = vunpack.c.l.b16 %v453
        %v651 = vunpack.c.l.b16 %v454
        %v652 = vpack.c.b16 %v637, %v636
        %v653 = vpack.c.b16 %v639, %v638
        %v654 = vpack.c.b16 %v641, %v640
        %v655 = vpack.c.b16 %v643, %v642
        %v656 = vpack.c.b16 %v645, %v644
        %v657 = vpack.c.b16 %v647, %v646
        %v658 = vpack.c.b16 %v649, %v648
        %v659 = vpack.c.b16 %v651, %v650
        %668 = vmatpush.bf16.msra.mxu0 %v659
        %669 = vmatpush.bf16.msra.mxu0 %v658
        %670 = vmatpush.bf16.msra.mxu0 %v657
        %671 = vmatpush.bf16.msra.mxu0 %v656
        %672 = vmatpush.bf16.msra.mxu0 %v655
        %673 = vmatpush.bf16.msra.mxu0 %v654
        %674 = vmatpush.bf16.msra.mxu0 %v653
        %675 = vmatpush.bf16.msra.mxu0 %v652
        %676 = vmatmul.bf16.gmra.mxu0 %v537
        %v677 = vpop.f32.mrf.mxu0
        %v678 = vadd.f32 %v618, %v677
        %v679 = vpop.f32.mrf.mxu0
        %v680 = vadd.f32 %v618, %v679
        %681 = vmatmul.bf16.gmra.mxu0 %v538
        %v682 = vpop.f32.mrf.mxu0
        %v683 = vadd.f32 %v618, %v682
        %v684 = vpop.f32.mrf.mxu0
        %v685 = vadd.f32 %v618, %v684
        %686 = vmatmul.bf16.gmra.mxu0 %v539
        %v687 = vpop.f32.mrf.mxu0
        %v688 = vadd.f32 %v618, %v687
        %v689 = vpop.f32.mrf.mxu0
        %v690 = vadd.f32 %v618, %v689
        %691 = vmatmul.bf16.gmra.mxu0 %v540
        %v692 = vpop.f32.mrf.mxu0
        %v693 = vadd.f32 %v618, %v692
        %v694 = vpop.f32.mrf.mxu0
        %v695 = vadd.f32 %v618, %v694
        %696 = vmatmul.bf16.gmra.mxu0 %v541
        %v697 = vpop.f32.mrf.mxu0
        %v698 = vadd.f32 %v618, %v697
        %v699 = vpop.f32.mrf.mxu0
        %v700 = vadd.f32 %v618, %v699
        %701 = vmatmul.bf16.gmra.mxu0 %v542
        %v702 = vpop.f32.mrf.mxu0
        %v703 = vadd.f32 %v618, %v702
        %v704 = vpop.f32.mrf.mxu0
        %v705 = vadd.f32 %v618, %v704
        %706 = vmatmul.bf16.gmra.mxu0 %v543
        %v707 = vpop.f32.mrf.mxu0
        %v708 = vadd.f32 %v618, %v707
        %v709 = vpop.f32.mrf.mxu0
        %v710 = vadd.f32 %v618, %v709
        %711 = vmatmul.bf16.gmra.mxu0 %v544
        %v712 = vpop.f32.mrf.mxu0
        %v713 = vadd.f32 %v618, %v712
        %v714 = vpop.f32.mrf.mxu0
        %v715 = vadd.f32 %v618, %v714
        %716 = vmatmul.bf16.gmra.mxu0 %v545
        %v717 = vpop.f32.mrf.mxu0
        %v718 = vadd.f32 %v618, %v717
        %v719 = vpop.f32.mrf.mxu0
        %v720 = vadd.f32 %v618, %v719
        %721 = vmatmul.bf16.gmra.mxu0 %v546
        %v722 = vpop.f32.mrf.mxu0
        %v723 = vadd.f32 %v618, %v722
        %v724 = vpop.f32.mrf.mxu0
        %v725 = vadd.f32 %v618, %v724
        %726 = vmatmul.bf16.gmra.mxu0 %v547
        %v727 = vpop.f32.mrf.mxu0
        %v728 = vadd.f32 %v618, %v727
        %v729 = vpop.f32.mrf.mxu0
        %v730 = vadd.f32 %v618, %v729
        %731 = vmatmul.bf16.gmra.mxu0 %v548
        %v732 = vpop.f32.mrf.mxu0
        %v733 = vadd.f32 %v618, %v732
        %v734 = vpop.f32.mrf.mxu0
        %v735 = vadd.f32 %v618, %v734
        %736 = vmatmul.bf16.gmra.mxu0 %v549
        %v737 = vpop.f32.mrf.mxu0
        %v738 = vadd.f32 %v618, %v737
        %v739 = vpop.f32.mrf.mxu0
        %v740 = vadd.f32 %v618, %v739
        %741 = vmatmul.bf16.gmra.mxu0 %v550
        %v742 = vpop.f32.mrf.mxu0
        %v743 = vadd.f32 %v618, %v742
        %v744 = vpop.f32.mrf.mxu0
        %v745 = vadd.f32 %v618, %v744
        %746 = vmatmul.bf16.gmra.mxu0 %v551
        %v747 = vpop.f32.mrf.mxu0
        %v748 = vadd.f32 %v618, %v747
        %v749 = vpop.f32.mrf.mxu0
        %v750 = vadd.f32 %v618, %v749
        %751 = vmatmul.bf16.gmra.mxu0 %v552
        %v752 = vpop.f32.mrf.mxu0
        %v753 = vadd.f32 %v618, %v752
        %v754 = vpop.f32.mrf.mxu0
        %v755 = vadd.f32 %v618, %v754
        %756 = vmatmul.bf16.gmra.mxu0 %v601
        %v757 = vpop.f32.mrf.mxu0
        %v758 = vadd.f32 %v618, %v757
        %v759 = vpop.f32.mrf.mxu0
        %v760 = vadd.f32 %v618, %v759
        %761 = vmatmul.bf16.gmra.mxu0 %v602
        %v762 = vpop.f32.mrf.mxu0
        %v763 = vadd.f32 %v618, %v762
        %v764 = vpop.f32.mrf.mxu0
        %v765 = vadd.f32 %v618, %v764
        %766 = vmatmul.bf16.gmra.mxu0 %v603
        %v767 = vpop.f32.mrf.mxu0
        %v768 = vadd.f32 %v618, %v767
        %v769 = vpop.f32.mrf.mxu0
        %v770 = vadd.f32 %v618, %v769
        %771 = vmatmul.bf16.gmra.mxu0 %v604
        %v772 = vpop.f32.mrf.mxu0
        %v773 = vadd.f32 %v618, %v772
        %v774 = vpop.f32.mrf.mxu0
        %v775 = vadd.f32 %v618, %v774
        %776 = vmatmul.bf16.gmra.mxu0 %v605
        %v777 = vpop.f32.mrf.mxu0
        %v778 = vadd.f32 %v618, %v777
        %v779 = vpop.f32.mrf.mxu0
        %v780 = vadd.f32 %v618, %v779
        %781 = vmatmul.bf16.gmra.mxu0 %v606
        %v782 = vpop.f32.mrf.mxu0
        %v783 = vadd.f32 %v618, %v782
        %v784 = vpop.f32.mrf.mxu0
        %v785 = vadd.f32 %v618, %v784
        %786 = vmatmul.bf16.gmra.mxu0 %v607
        %v787 = vpop.f32.mrf.mxu0
        %v788 = vadd.f32 %v618, %v787
        %v789 = vpop.f32.mrf.mxu0
        %v790 = vadd.f32 %v618, %v789
        %791 = vmatmul.bf16.gmra.mxu0 %v608
        %v792 = vpop.f32.mrf.mxu0
        %v793 = vadd.f32 %v618, %v792
        %v794 = vpop.f32.mrf.mxu0
        %v795 = vadd.f32 %v618, %v794
        %796 = vdwg.mxu0
        %v797 = vmax.f32 %v678, 0.0
        %v798 = vmax.f32 %v680, 0.0
        %v799 = vmax.f32 %v683, 0.0
        %v800 = vmax.f32 %v685, 0.0
        %v801 = vmax.f32 %v688, 0.0
        %v802 = vmax.f32 %v690, 0.0
        %v803 = vmax.f32 %v693, 0.0
        %v804 = vmax.f32 %v695, 0.0
        %v805 = vmax.f32 %v698, 0.0
        %v806 = vmax.f32 %v700, 0.0
        %v807 = vmax.f32 %v703, 0.0
        %v808 = vmax.f32 %v705, 0.0
        %v809 = vmax.f32 %v708, 0.0
        %v810 = vmax.f32 %v710, 0.0
        %v811 = vmax.f32 %v713, 0.0
        %v812 = vmax.f32 %v715, 0.0
        %v813 = vmax.f32 %v718, 0.0
        %v814 = vmax.f32 %v720, 0.0
        %v815 = vmax.f32 %v723, 0.0
        %v816 = vmax.f32 %v725, 0.0
        %v817 = vmax.f32 %v728, 0.0
        %v818 = vmax.f32 %v730, 0.0
        %v819 = vmax.f32 %v733, 0.0
        %v820 = vmax.f32 %v735, 0.0
        %v821 = vmax.f32 %v738, 0.0
        %v822 = vmax.f32 %v740, 0.0
        %v823 = vmax.f32 %v743, 0.0
        %v824 = vmax.f32 %v745, 0.0
        %v825 = vmax.f32 %v748, 0.0
        %v826 = vmax.f32 %v750, 0.0
        %v827 = vmax.f32 %v753, 0.0
        %v828 = vmax.f32 %v755, 0.0
        %v829 = vmax.f32 %v758, 0.0
        %v830 = vmax.f32 %v760, 0.0
        %v831 = vmax.f32 %v763, 0.0
        %v832 = vmax.f32 %v765, 0.0
        %v833 = vmax.f32 %v768, 0.0
        %v834 = vmax.f32 %v770, 0.0
        %v835 = vmax.f32 %v773, 0.0
        %v836 = vmax.f32 %v775, 0.0
        %v837 = vmax.f32 %v778, 0.0
        %v838 = vmax.f32 %v780, 0.0
        %v839 = vmax.f32 %v783, 0.0
        %v840 = vmax.f32 %v785, 0.0
        %v841 = vmax.f32 %v788, 0.0
        %v842 = vmax.f32 %v790, 0.0
        %v843 = vmax.f32 %v793, 0.0
        %v844 = vmax.f32 %v795, 0.0
        %v845 = vpack.c.bf16 %v798, %v797
        %v846 = vpack.c.bf16 %v800, %v799
        %v847 = vpack.c.bf16 %v802, %v801
        %v848 = vpack.c.bf16 %v804, %v803
        %v849 = vpack.c.bf16 %v806, %v805
        %v850 = vpack.c.bf16 %v808, %v807
        %v851 = vpack.c.bf16 %v810, %v809
        %v852 = vpack.c.bf16 %v812, %v811
        %v853 = vpack.c.bf16 %v814, %v813
        %v854 = vpack.c.bf16 %v816, %v815
        %v855 = vpack.c.bf16 %v818, %v817
        %v856 = vpack.c.bf16 %v820, %v819
        %v857 = vpack.c.bf16 %v822, %v821
        %v858 = vpack.c.bf16 %v824, %v823
        %v859 = vpack.c.bf16 %v826, %v825
        %v860 = vpack.c.bf16 %v828, %v827
        %v861 = vpack.c.bf16 %v830, %v829
        %v862 = vpack.c.bf16 %v832, %v831
        %v863 = vpack.c.bf16 %v834, %v833
        %v864 = vpack.c.bf16 %v836, %v835
        %v865 = vpack.c.bf16 %v838, %v837
        %v866 = vpack.c.bf16 %v840, %v839
        %v867 = vpack.c.bf16 %v842, %v841
        %v868 = vpack.c.bf16 %v844, %v843
        %v870 = vperm.slane %v472, 0
        %v888 = vunpack.c.l.b16 %v455
        %v889 = vunpack.c.l.b16 %v456
        %v890 = vunpack.c.l.b16 %v457
        %v891 = vunpack.c.l.b16 %v458
        %v892 = vunpack.c.l.b16 %v459
        %v893 = vunpack.c.l.b16 %v460
        %v894 = vunpack.c.l.b16 %v461
        %v895 = vunpack.c.l.b16 %v462
        %v896 = vunpack.c.l.b16 %v463
        %v897 = vunpack.c.l.b16 %v464
        %v898 = vunpack.c.l.b16 %v465
        %v899 = vunpack.c.l.b16 %v466
        %v900 = vunpack.c.l.b16 %v467
        %v901 = vunpack.c.l.b16 %v468
        %v902 = vunpack.c.l.b16 %v469
        %v903 = vunpack.c.l.b16 %v470
        %v904 = vpack.c.b16 %v889, %v888
        %v905 = vpack.c.b16 %v891, %v890
        %v906 = vpack.c.b16 %v893, %v892
        %v907 = vpack.c.b16 %v895, %v894
        %v908 = vpack.c.b16 %v897, %v896
        %v909 = vpack.c.b16 %v899, %v898
        %v910 = vpack.c.b16 %v901, %v900
        %v911 = vpack.c.b16 %v903, %v902
        %920 = vmatpush.bf16.msra.mxu0 %v911
        %921 = vmatpush.bf16.msra.mxu0 %v910
        %922 = vmatpush.bf16.msra.mxu0 %v909
        %923 = vmatpush.bf16.msra.mxu0 %v908
        %924 = vmatpush.bf16.msra.mxu0 %v907
        %925 = vmatpush.bf16.msra.mxu0 %v906
        %926 = vmatpush.bf16.msra.mxu0 %v905
        %927 = vmatpush.bf16.msra.mxu0 %v904
        %928 = vmatmul.bf16.gmra.mxu0 %v845
        %v929 = vpop.f32.mrf.mxu0
        %v930 = vadd.f32 %v870, %v929
        %v931 = vpop.f32.mrf.mxu0
        %v932 = vadd.f32 %v870, %v931
        %933 = vmatmul.bf16.gmra.mxu0 %v846
        %v934 = vpop.f32.mrf.mxu0
        %v935 = vadd.f32 %v870, %v934
        %v936 = vpop.f32.mrf.mxu0
        %v937 = vadd.f32 %v870, %v936
        %938 = vmatmul.bf16.gmra.mxu0 %v847
        %v939 = vpop.f32.mrf.mxu0
        %v940 = vadd.f32 %v870, %v939
        %v941 = vpop.f32.mrf.mxu0
        %v942 = vadd.f32 %v870, %v941
        %943 = vmatmul.bf16.gmra.mxu0 %v848
        %v944 = vpop.f32.mrf.mxu0
        %v945 = vadd.f32 %v870, %v944
        %v946 = vpop.f32.mrf.mxu0
        %v947 = vadd.f32 %v870, %v946
        %948 = vmatmul.bf16.gmra.mxu0 %v849
        %v949 = vpop.f32.mrf.mxu0
        %v950 = vadd.f32 %v870, %v949
        %v951 = vpop.f32.mrf.mxu0
        %v952 = vadd.f32 %v870, %v951
        %953 = vmatmul.bf16.gmra.mxu0 %v850
        %v954 = vpop.f32.mrf.mxu0
        %v955 = vadd.f32 %v870, %v954
        %v956 = vpop.f32.mrf.mxu0
        %v957 = vadd.f32 %v870, %v956
        %958 = vmatmul.bf16.gmra.mxu0 %v851
        %v959 = vpop.f32.mrf.mxu0
        %v960 = vadd.f32 %v870, %v959
        %v961 = vpop.f32.mrf.mxu0
        %v962 = vadd.f32 %v870, %v961
        %963 = vmatmul.bf16.gmra.mxu0 %v852
        %v964 = vpop.f32.mrf.mxu0
        %v965 = vadd.f32 %v870, %v964
        %v966 = vpop.f32.mrf.mxu0
        %v967 = vadd.f32 %v870, %v966
        %968 = vmatmul.bf16.gmra.mxu0 %v853
        %v969 = vpop.f32.mrf.mxu0
        %v970 = vadd.f32 %v870, %v969
        %v971 = vpop.f32.mrf.mxu0
        %v972 = vadd.f32 %v870, %v971
        %973 = vmatmul.bf16.gmra.mxu0 %v854
        %v974 = vpop.f32.mrf.mxu0
        %v975 = vadd.f32 %v870, %v974
        %v976 = vpop.f32.mrf.mxu0
        %v977 = vadd.f32 %v870, %v976
        %978 = vmatmul.bf16.gmra.mxu0 %v855
        %v979 = vpop.f32.mrf.mxu0
        %v980 = vadd.f32 %v870, %v979
        %v981 = vpop.f32.mrf.mxu0
        %v982 = vadd.f32 %v870, %v981
        %983 = vmatmul.bf16.gmra.mxu0 %v856
        %v984 = vpop.f32.mrf.mxu0
        %v985 = vadd.f32 %v870, %v984
        %v986 = vpop.f32.mrf.mxu0
        %v987 = vadd.f32 %v870, %v986
        %988 = vmatmul.bf16.gmra.mxu0 %v857
        %v989 = vpop.f32.mrf.mxu0
        %v990 = vadd.f32 %v870, %v989
        %v991 = vpop.f32.mrf.mxu0
        %v992 = vadd.f32 %v870, %v991
        %993 = vmatmul.bf16.gmra.mxu0 %v858
        %v994 = vpop.f32.mrf.mxu0
        %v995 = vadd.f32 %v870, %v994
        %v996 = vpop.f32.mrf.mxu0
        %v997 = vadd.f32 %v870, %v996
        %998 = vmatmul.bf16.gmra.mxu0 %v859
        %v999 = vpop.f32.mrf.mxu0
        %v1000 = vadd.f32 %v870, %v999
        %v1001 = vpop.f32.mrf.mxu0
        %v1002 = vadd.f32 %v870, %v1001
        %1003 = vmatmul.bf16.gmra.mxu0 %v860
        %v1004 = vpop.f32.mrf.mxu0
        %v1005 = vadd.f32 %v870, %v1004
        %v1006 = vpop.f32.mrf.mxu0
        %v1007 = vadd.f32 %v870, %v1006
        %1008 = vmatmul.bf16.gmra.mxu0 %v861
        %v1009 = vpop.f32.mrf.mxu0
        %v1010 = vadd.f32 %v870, %v1009
        %v1011 = vpop.f32.mrf.mxu0
        %v1012 = vadd.f32 %v870, %v1011
        %1013 = vmatmul.bf16.gmra.mxu0 %v862
        %v1014 = vpop.f32.mrf.mxu0
        %v1015 = vadd.f32 %v870, %v1014
        %v1016 = vpop.f32.mrf.mxu0
        %v1017 = vadd.f32 %v870, %v1016
        %1018 = vmatmul.bf16.gmra.mxu0 %v863
        %v1019 = vpop.f32.mrf.mxu0
        %v1020 = vadd.f32 %v870, %v1019
        %v1021 = vpop.f32.mrf.mxu0
        %v1022 = vadd.f32 %v870, %v1021
        %1023 = vmatmul.bf16.gmra.mxu0 %v864
        %v1024 = vpop.f32.mrf.mxu0
        %v1025 = vadd.f32 %v870, %v1024
        %v1026 = vpop.f32.mrf.mxu0
        %v1027 = vadd.f32 %v870, %v1026
        %1028 = vmatmul.bf16.gmra.mxu0 %v865
        %v1029 = vpop.f32.mrf.mxu0
        %v1030 = vadd.f32 %v870, %v1029
        %v1031 = vpop.f32.mrf.mxu0
        %v1032 = vadd.f32 %v870, %v1031
        %1033 = vmatmul.bf16.gmra.mxu0 %v866
        %v1034 = vpop.f32.mrf.mxu0
        %v1035 = vadd.f32 %v870, %v1034
        %v1036 = vpop.f32.mrf.mxu0
        %v1037 = vadd.f32 %v870, %v1036
        %1038 = vmatmul.bf16.gmra.mxu0 %v867
        %v1039 = vpop.f32.mrf.mxu0
        %v1040 = vadd.f32 %v870, %v1039
        %v1041 = vpop.f32.mrf.mxu0
        %v1042 = vadd.f32 %v870, %v1041
        %1043 = vmatmul.bf16.gmra.mxu0 %v868
        %v1044 = vpop.f32.mrf.mxu0
        %v1045 = vadd.f32 %v870, %v1044
        %v1046 = vpop.f32.mrf.mxu0
        %v1047 = vadd.f32 %v870, %v1046
        %1048 = vdwg.mxu0
        %v1049 = vmax.f32 %v930, 0.0
        %v1050 = vmax.f32 %v932, 0.0
        %v1051 = vmax.f32 %v935, 0.0
        %v1052 = vmax.f32 %v937, 0.0
        %v1053 = vmax.f32 %v940, 0.0
        %v1054 = vmax.f32 %v942, 0.0
        %v1055 = vmax.f32 %v945, 0.0
        %v1056 = vmax.f32 %v947, 0.0
        %v1057 = vmax.f32 %v950, 0.0
        %v1058 = vmax.f32 %v952, 0.0
        %v1059 = vmax.f32 %v955, 0.0
        %v1060 = vmax.f32 %v957, 0.0
        %v1061 = vmax.f32 %v960, 0.0
        %v1062 = vmax.f32 %v962, 0.0
        %v1063 = vmax.f32 %v965, 0.0
        %v1064 = vmax.f32 %v967, 0.0
        %v1065 = vmax.f32 %v970, 0.0
        %v1066 = vmax.f32 %v972, 0.0
        %v1067 = vmax.f32 %v975, 0.0
        %v1068 = vmax.f32 %v977, 0.0
        %v1069 = vmax.f32 %v980, 0.0
        %v1070 = vmax.f32 %v982, 0.0
        %v1071 = vmax.f32 %v985, 0.0
        %v1072 = vmax.f32 %v987, 0.0
        %v1073 = vmax.f32 %v990, 0.0
        %v1074 = vmax.f32 %v992, 0.0
        %v1075 = vmax.f32 %v995, 0.0
        %v1076 = vmax.f32 %v997, 0.0
        %v1077 = vmax.f32 %v1000, 0.0
        %v1078 = vmax.f32 %v1002, 0.0
        %v1079 = vmax.f32 %v1005, 0.0
        %v1080 = vmax.f32 %v1007, 0.0
        %v1081 = vmax.f32 %v1010, 0.0
        %v1082 = vmax.f32 %v1012, 0.0
        %v1083 = vmax.f32 %v1015, 0.0
        %v1084 = vmax.f32 %v1017, 0.0
        %v1085 = vmax.f32 %v1020, 0.0
        %v1086 = vmax.f32 %v1022, 0.0
        %v1087 = vmax.f32 %v1025, 0.0
        %v1088 = vmax.f32 %v1027, 0.0
        %v1089 = vmax.f32 %v1030, 0.0
        %v1090 = vmax.f32 %v1032, 0.0
        %v1091 = vmax.f32 %v1035, 0.0
        %v1092 = vmax.f32 %v1037, 0.0
        %v1093 = vmax.f32 %v1040, 0.0
        %v1094 = vmax.f32 %v1042, 0.0
        %v1095 = vmax.f32 %v1045, 0.0
        %v1096 = vmax.f32 %v1047, 0.0
        %v1097 = vpack.c.bf16 %v1049, %v1049
        %v1098 = vpack.c.bf16 %v1050, %v1050
        %v1099 = vpack.c.bf16 %v1051, %v1051
        %v1100 = vpack.c.bf16 %v1052, %v1052
        %v1101 = vpack.c.bf16 %v1053, %v1053
        %v1102 = vpack.c.bf16 %v1054, %v1054
        %v1103 = vpack.c.bf16 %v1055, %v1055
        %v1104 = vpack.c.bf16 %v1056, %v1056
        %v1105 = vpack.c.bf16 %v1057, %v1057
        %v1106 = vpack.c.bf16 %v1058, %v1058
        %v1107 = vpack.c.bf16 %v1059, %v1059
        %v1108 = vpack.c.bf16 %v1060, %v1060
        %v1109 = vpack.c.bf16 %v1061, %v1061
        %v1110 = vpack.c.bf16 %v1062, %v1062
        %v1111 = vpack.c.bf16 %v1063, %v1063
        %v1112 = vpack.c.bf16 %v1064, %v1064
        %v1113 = vpack.c.bf16 %v1065, %v1065
        %v1114 = vpack.c.bf16 %v1066, %v1066
        %v1115 = vpack.c.bf16 %v1067, %v1067
        %v1116 = vpack.c.bf16 %v1068, %v1068
        %v1117 = vpack.c.bf16 %v1069, %v1069
        %v1118 = vpack.c.bf16 %v1070, %v1070
        %v1119 = vpack.c.bf16 %v1071, %v1071
        %v1120 = vpack.c.bf16 %v1072, %v1072
        %v1121 = vpack.c.bf16 %v1073, %v1073
        %v1122 = vpack.c.bf16 %v1074, %v1074
        %v1123 = vpack.c.bf16 %v1075, %v1075
        %v1124 = vpack.c.bf16 %v1076, %v1076
        %v1125 = vpack.c.bf16 %v1077, %v1077
        %v1126 = vpack.c.bf16 %v1078, %v1078
        %v1127 = vpack.c.bf16 %v1079, %v1079
        %v1128 = vpack.c.bf16 %v1080, %v1080
        %v1129 = vpack.c.bf16 %v1081, %v1081
        %v1130 = vpack.c.bf16 %v1082, %v1082
        %v1131 = vpack.c.bf16 %v1083, %v1083
        %v1132 = vpack.c.bf16 %v1084, %v1084
        %v1133 = vpack.c.bf16 %v1085, %v1085
        %v1134 = vpack.c.bf16 %v1086, %v1086
        %v1135 = vpack.c.bf16 %v1087, %v1087
        %v1136 = vpack.c.bf16 %v1088, %v1088
        %v1137 = vpack.c.bf16 %v1089, %v1089
        %v1138 = vpack.c.bf16 %v1090, %v1090
        %v1139 = vpack.c.bf16 %v1091, %v1091
        %v1140 = vpack.c.bf16 %v1092, %v1092
        %v1141 = vpack.c.bf16 %v1093, %v1093
        %v1142 = vpack.c.bf16 %v1094, %v1094
        %v1143 = vpack.c.bf16 %v1095, %v1095
        %v1144 = vpack.c.bf16 %v1096, %v1096
        %v1147 = vunpack.c.l.b16 %v1097
        %v1148 = vunpack.c.l.b16 %v1098
        %v1149 = vpack.c.b16 %v1148, %v1147
        %1151 = vmatpush.bf16.xpose.msra.mxu0 0
        %1152 = vmatpush.bf16.xpose.msra.mxu0 0
        %1153 = vmatpush.bf16.xpose.msra.mxu0 0
        %1154 = vmatpush.bf16.xpose.msra.mxu0 0
        %1155 = vmatpush.bf16.xpose.msra.mxu0 0
        %1156 = vmatpush.bf16.xpose.msra.mxu0 0
        %1157 = vmatpush.bf16.xpose.msra.mxu0 0
        %1158 = vmatpush.bf16.xpose.msra.mxu0 %v1129
        %1159 = vmatmul.bf16.gmra.mxu0 %v1149
        %v1160 = vpop.f32.mrf.mxu0
        %v1161 = vadd.f32 0.0, %v1160
        %v1162 = vpop.f32.mrf.mxu0
        %v1163 = vadd.f32 0.0, %v1162
        %1164 = vdwg.mxu0
        %v1167 = vunpack.c.l.b16 %v1099
        %v1168 = vunpack.c.l.b16 %v1100
        %v1169 = vpack.c.b16 %v1168, %v1167
        %1171 = vmatpush.bf16.xpose.msra.mxu0 0
        %1172 = vmatpush.bf16.xpose.msra.mxu0 0
        %1173 = vmatpush.bf16.xpose.msra.mxu0 0
        %1174 = vmatpush.bf16.xpose.msra.mxu0 0
        %1175 = vmatpush.bf16.xpose.msra.mxu0 0
        %1176 = vmatpush.bf16.xpose.msra.mxu0 0
        %1177 = vmatpush.bf16.xpose.msra.mxu0 0
        %1178 = vmatpush.bf16.xpose.msra.mxu0 %v1130
        %1179 = vmatmul.bf16.gmra.mxu0 %v1169
        %v1180 = vpop.f32.mrf.mxu0
        %v1181 = vadd.f32 0.0, %v1180
        %v1182 = vpop.f32.mrf.mxu0
        %v1183 = vadd.f32 0.0, %v1182
        %1184 = vdwg.mxu0
        %v1187 = vunpack.c.l.b16 %v1101
        %v1188 = vunpack.c.l.b16 %v1102
        %v1189 = vpack.c.b16 %v1188, %v1187
        %1191 = vmatpush.bf16.xpose.msra.mxu0 0
        %1192 = vmatpush.bf16.xpose.msra.mxu0 0
        %1193 = vmatpush.bf16.xpose.msra.mxu0 0
        %1194 = vmatpush.bf16.xpose.msra.mxu0 0
        %1195 = vmatpush.bf16.xpose.msra.mxu0 0
        %1196 = vmatpush.bf16.xpose.msra.mxu0 0
        %1197 = vmatpush.bf16.xpose.msra.mxu0 0
        %1198 = vmatpush.bf16.xpose.msra.mxu0 %v1131
        %1199 = vmatmul.bf16.gmra.mxu0 %v1189
        %v1200 = vpop.f32.mrf.mxu0
        %v1201 = vadd.f32 0.0, %v1200
        %v1202 = vpop.f32.mrf.mxu0
        %v1203 = vadd.f32 0.0, %v1202
        %1204 = vdwg.mxu0
        %v1207 = vunpack.c.l.b16 %v1103
        %v1208 = vunpack.c.l.b16 %v1104
        %v1209 = vpack.c.b16 %v1208, %v1207
        %1211 = vmatpush.bf16.xpose.msra.mxu0 0
        %1212 = vmatpush.bf16.xpose.msra.mxu0 0
        %1213 = vmatpush.bf16.xpose.msra.mxu0 0
        %1214 = vmatpush.bf16.xpose.msra.mxu0 0
        %1215 = vmatpush.bf16.xpose.msra.mxu0 0
        %1216 = vmatpush.bf16.xpose.msra.mxu0 0
        %1217 = vmatpush.bf16.xpose.msra.mxu0 0
        %1218 = vmatpush.bf16.xpose.msra.mxu0 %v1132
        %1219 = vmatmul.bf16.gmra.mxu0 %v1209
        %v1220 = vpop.f32.mrf.mxu0
        %v1221 = vadd.f32 0.0, %v1220
        %v1222 = vpop.f32.mrf.mxu0
        %v1223 = vadd.f32 0.0, %v1222
        %1224 = vdwg.mxu0
        %v1227 = vunpack.c.l.b16 %v1105
        %v1228 = vunpack.c.l.b16 %v1106
        %v1229 = vpack.c.b16 %v1228, %v1227
        %1231 = vmatpush.bf16.xpose.msra.mxu0 0
        %1232 = vmatpush.bf16.xpose.msra.mxu0 0
        %1233 = vmatpush.bf16.xpose.msra.mxu0 0
        %1234 = vmatpush.bf16.xpose.msra.mxu0 0
        %1235 = vmatpush.bf16.xpose.msra.mxu0 0
        %1236 = vmatpush.bf16.xpose.msra.mxu0 0
        %1237 = vmatpush.bf16.xpose.msra.mxu0 0
        %1238 = vmatpush.bf16.xpose.msra.mxu0 %v1133
        %1239 = vmatmul.bf16.gmra.mxu0 %v1229
        %v1240 = vpop.f32.mrf.mxu0
        %v1241 = vadd.f32 0.0, %v1240
        %v1242 = vpop.f32.mrf.mxu0
        %v1243 = vadd.f32 0.0, %v1242
        %1244 = vdwg.mxu0
        %v1247 = vunpack.c.l.b16 %v1107
        %v1248 = vunpack.c.l.b16 %v1108
        %v1249 = vpack.c.b16 %v1248, %v1247
        %1251 = vmatpush.bf16.xpose.msra.mxu0 0
        %1252 = vmatpush.bf16.xpose.msra.mxu0 0
        %1253 = vmatpush.bf16.xpose.msra.mxu0 0
        %1254 = vmatpush.bf16.xpose.msra.mxu0 0
        %1255 = vmatpush.bf16.xpose.msra.mxu0 0
        %1256 = vmatpush.bf16.xpose.msra.mxu0 0
        %1257 = vmatpush.bf16.xpose.msra.mxu0 0
        %1258 = vmatpush.bf16.xpose.msra.mxu0 %v1134
        %1259 = vmatmul.bf16.gmra.mxu0 %v1249
        %v1260 = vpop.f32.mrf.mxu0
        %v1261 = vadd.f32 0.0, %v1260
        %v1262 = vpop.f32.mrf.mxu0
        %v1263 = vadd.f32 0.0, %v1262
        %1264 = vdwg.mxu0
        %v1267 = vunpack.c.l.b16 %v1109
        %v1268 = vunpack.c.l.b16 %v1110
        %v1269 = vpack.c.b16 %v1268, %v1267
        %1271 = vmatpush.bf16.xpose.msra.mxu0 0
        %1272 = vmatpush.bf16.xpose.msra.mxu0 0
        %1273 = vmatpush.bf16.xpose.msra.mxu0 0
        %1274 = vmatpush.bf16.xpose.msra.mxu0 0
        %1275 = vmatpush.bf16.xpose.msra.mxu0 0
        %1276 = vmatpush.bf16.xpose.msra.mxu0 0
        %1277 = vmatpush.bf16.xpose.msra.mxu0 0
        %1278 = vmatpush.bf16.xpose.msra.mxu0 %v1135
        %1279 = vmatmul.bf16.gmra.mxu0 %v1269
        %v1280 = vpop.f32.mrf.mxu0
        %v1281 = vadd.f32 0.0, %v1280
        %v1282 = vpop.f32.mrf.mxu0
        %v1283 = vadd.f32 0.0, %v1282
        %1284 = vdwg.mxu0
        %v1287 = vunpack.c.l.b16 %v1111
        %v1288 = vunpack.c.l.b16 %v1112
        %v1289 = vpack.c.b16 %v1288, %v1287
        %1291 = vmatpush.bf16.xpose.msra.mxu0 0
        %1292 = vmatpush.bf16.xpose.msra.mxu0 0
        %1293 = vmatpush.bf16.xpose.msra.mxu0 0
        %1294 = vmatpush.bf16.xpose.msra.mxu0 0
        %1295 = vmatpush.bf16.xpose.msra.mxu0 0
        %1296 = vmatpush.bf16.xpose.msra.mxu0 0
        %1297 = vmatpush.bf16.xpose.msra.mxu0 0
        %1298 = vmatpush.bf16.xpose.msra.mxu0 %v1136
        %1299 = vmatmul.bf16.gmra.mxu0 %v1289
        %v1300 = vpop.f32.mrf.mxu0
        %v1301 = vadd.f32 0.0, %v1300
        %v1302 = vpop.f32.mrf.mxu0
        %v1303 = vadd.f32 0.0, %v1302
        %1304 = vdwg.mxu0
        %v1307 = vunpack.c.l.b16 %v1113
        %v1308 = vunpack.c.l.b16 %v1114
        %v1309 = vpack.c.b16 %v1308, %v1307
        %1311 = vmatpush.bf16.xpose.msra.mxu0 0
        %1312 = vmatpush.bf16.xpose.msra.mxu0 0
        %1313 = vmatpush.bf16.xpose.msra.mxu0 0
        %1314 = vmatpush.bf16.xpose.msra.mxu0 0
        %1315 = vmatpush.bf16.xpose.msra.mxu0 0
        %1316 = vmatpush.bf16.xpose.msra.mxu0 0
        %1317 = vmatpush.bf16.xpose.msra.mxu0 0
        %1318 = vmatpush.bf16.xpose.msra.mxu0 %v1137
        %1319 = vmatmul.bf16.gmra.mxu0 %v1309
        %v1320 = vpop.f32.mrf.mxu0
        %v1321 = vadd.f32 0.0, %v1320
        %v1322 = vpop.f32.mrf.mxu0
        %v1323 = vadd.f32 0.0, %v1322
        %1324 = vdwg.mxu0
        %v1327 = vunpack.c.l.b16 %v1115
        %v1328 = vunpack.c.l.b16 %v1116
        %v1329 = vpack.c.b16 %v1328, %v1327
        %1331 = vmatpush.bf16.xpose.msra.mxu0 0
        %1332 = vmatpush.bf16.xpose.msra.mxu0 0
        %1333 = vmatpush.bf16.xpose.msra.mxu0 0
        %1334 = vmatpush.bf16.xpose.msra.mxu0 0
        %1335 = vmatpush.bf16.xpose.msra.mxu0 0
        %1336 = vmatpush.bf16.xpose.msra.mxu0 0
        %1337 = vmatpush.bf16.xpose.msra.mxu0 0
        %1338 = vmatpush.bf16.xpose.msra.mxu0 %v1138
        %1339 = vmatmul.bf16.gmra.mxu0 %v1329
        %v1340 = vpop.f32.mrf.mxu0
        %v1341 = vadd.f32 0.0, %v1340
        %v1342 = vpop.f32.mrf.mxu0
        %v1343 = vadd.f32 0.0, %v1342
        %1344 = vdwg.mxu0
        %v1347 = vunpack.c.l.b16 %v1117
        %v1348 = vunpack.c.l.b16 %v1118
        %v1349 = vpack.c.b16 %v1348, %v1347
        %1351 = vmatpush.bf16.xpose.msra.mxu0 0
        %1352 = vmatpush.bf16.xpose.msra.mxu0 0
        %1353 = vmatpush.bf16.xpose.msra.mxu0 0
        %1354 = vmatpush.bf16.xpose.msra.mxu0 0
        %1355 = vmatpush.bf16.xpose.msra.mxu0 0
        %1356 = vmatpush.bf16.xpose.msra.mxu0 0
        %1357 = vmatpush.bf16.xpose.msra.mxu0 0
        %1358 = vmatpush.bf16.xpose.msra.mxu0 %v1139
        %1359 = vmatmul.bf16.gmra.mxu0 %v1349
        %v1360 = vpop.f32.mrf.mxu0
        %v1361 = vadd.f32 0.0, %v1360
        %v1362 = vpop.f32.mrf.mxu0
        %v1363 = vadd.f32 0.0, %v1362
        %1364 = vdwg.mxu0
        %v1367 = vunpack.c.l.b16 %v1119
        %v1368 = vunpack.c.l.b16 %v1120
        %v1369 = vpack.c.b16 %v1368, %v1367
        %1371 = vmatpush.bf16.xpose.msra.mxu0 0
        %1372 = vmatpush.bf16.xpose.msra.mxu0 0
        %1373 = vmatpush.bf16.xpose.msra.mxu0 0
        %1374 = vmatpush.bf16.xpose.msra.mxu0 0
        %1375 = vmatpush.bf16.xpose.msra.mxu0 0
        %1376 = vmatpush.bf16.xpose.msra.mxu0 0
        %1377 = vmatpush.bf16.xpose.msra.mxu0 0
        %1378 = vmatpush.bf16.xpose.msra.mxu0 %v1140
        %1379 = vmatmul.bf16.gmra.mxu0 %v1369
        %v1380 = vpop.f32.mrf.mxu0
        %v1381 = vadd.f32 0.0, %v1380
        %v1382 = vpop.f32.mrf.mxu0
        %v1383 = vadd.f32 0.0, %v1382
        %1384 = vdwg.mxu0
        %v1387 = vunpack.c.l.b16 %v1121
        %v1388 = vunpack.c.l.b16 %v1122
        %v1389 = vpack.c.b16 %v1388, %v1387
        %1391 = vmatpush.bf16.xpose.msra.mxu0 0
        %1392 = vmatpush.bf16.xpose.msra.mxu0 0
        %1393 = vmatpush.bf16.xpose.msra.mxu0 0
        %1394 = vmatpush.bf16.xpose.msra.mxu0 0
        %1395 = vmatpush.bf16.xpose.msra.mxu0 0
        %1396 = vmatpush.bf16.xpose.msra.mxu0 0
        %1397 = vmatpush.bf16.xpose.msra.mxu0 0
        %1398 = vmatpush.bf16.xpose.msra.mxu0 %v1141
        %1399 = vmatmul.bf16.gmra.mxu0 %v1389
        %v1400 = vpop.f32.mrf.mxu0
        %v1401 = vadd.f32 0.0, %v1400
        %v1402 = vpop.f32.mrf.mxu0
        %v1403 = vadd.f32 0.0, %v1402
        %1404 = vdwg.mxu0
        %v1407 = vunpack.c.l.b16 %v1123
        %v1408 = vunpack.c.l.b16 %v1124
        %v1409 = vpack.c.b16 %v1408, %v1407
        %1411 = vmatpush.bf16.xpose.msra.mxu0 0
        %1412 = vmatpush.bf16.xpose.msra.mxu0 0
        %1413 = vmatpush.bf16.xpose.msra.mxu0 0
        %1414 = vmatpush.bf16.xpose.msra.mxu0 0
        %1415 = vmatpush.bf16.xpose.msra.mxu0 0
        %1416 = vmatpush.bf16.xpose.msra.mxu0 0
        %1417 = vmatpush.bf16.xpose.msra.mxu0 0
        %1418 = vmatpush.bf16.xpose.msra.mxu0 %v1142
        %1419 = vmatmul.bf16.gmra.mxu0 %v1409
        %v1420 = vpop.f32.mrf.mxu0
        %v1421 = vadd.f32 0.0, %v1420
        %v1422 = vpop.f32.mrf.mxu0
        %v1423 = vadd.f32 0.0, %v1422
        %1424 = vdwg.mxu0
        %v1427 = vunpack.c.l.b16 %v1125
        %v1428 = vunpack.c.l.b16 %v1126
        %v1429 = vpack.c.b16 %v1428, %v1427
        %1431 = vmatpush.bf16.xpose.msra.mxu0 0
        %1432 = vmatpush.bf16.xpose.msra.mxu0 0
        %1433 = vmatpush.bf16.xpose.msra.mxu0 0
        %1434 = vmatpush.bf16.xpose.msra.mxu0 0
        %1435 = vmatpush.bf16.xpose.msra.mxu0 0
        %1436 = vmatpush.bf16.xpose.msra.mxu0 0
        %1437 = vmatpush.bf16.xpose.msra.mxu0 0
        %1438 = vmatpush.bf16.xpose.msra.mxu0 %v1143
        %1439 = vmatmul.bf16.gmra.mxu0 %v1429
        %v1440 = vpop.f32.mrf.mxu0
        %v1441 = vadd.f32 0.0, %v1440
        %v1442 = vpop.f32.mrf.mxu0
        %v1443 = vadd.f32 0.0, %v1442
        %1444 = vdwg.mxu0
        %v1447 = vunpack.c.l.b16 %v1127
        %v1448 = vunpack.c.l.b16 %v1128
        %v1449 = vpack.c.b16 %v1448, %v1447
        %1451 = vmatpush.bf16.xpose.msra.mxu0 0
        %1452 = vmatpush.bf16.xpose.msra.mxu0 0
        %1453 = vmatpush.bf16.xpose.msra.mxu0 0
        %1454 = vmatpush.bf16.xpose.msra.mxu0 0
        %1455 = vmatpush.bf16.xpose.msra.mxu0 0
        %1456 = vmatpush.bf16.xpose.msra.mxu0 0
        %1457 = vmatpush.bf16.xpose.msra.mxu0 0
        %1458 = vmatpush.bf16.xpose.msra.mxu0 %v1144
        %1459 = vmatmul.bf16.gmra.mxu0 %v1449
        %v1460 = vpop.f32.mrf.mxu0
        %v1461 = vadd.f32 0.0, %v1460
        %v1462 = vpop.f32.mrf.mxu0
        %v1463 = vadd.f32 0.0, %v1462
        %1464 = vdwg.mxu0
        %1465 = vmatpush.bf16.xpose.msra.mxu0 0
        %1466 = vmatpush.bf16.xpose.msra.mxu0 0
        %1467 = vmatpush.bf16.xpose.msra.mxu0 0
        %1468 = vmatpush.bf16.xpose.msra.mxu0 0
        %1469 = vmatpush.bf16.xpose.msra.mxu0 0
        %1470 = vmatpush.bf16.xpose.msra.mxu0 0
        %1471 = vmatpush.bf16.xpose.msra.mxu0 0
        %1472 = vmatpush.bf16.xpose.msra.mxu0 %v1149
        %1473 = vmatmul.bf16.gmra.mxu0 %v1129
        %v1474 = vpop.f32.mrf.mxu0
        %v1475 = vadd.f32 0.0, %v1474
        %v1476 = vpop.f32.mrf.mxu0
        %1477 = vdwg.mxu0
        %1478 = vmatpush.bf16.xpose.msra.mxu0 0
        %1479 = vmatpush.bf16.xpose.msra.mxu0 0
        %1480 = vmatpush.bf16.xpose.msra.mxu0 0
        %1481 = vmatpush.bf16.xpose.msra.mxu0 0
        %1482 = vmatpush.bf16.xpose.msra.mxu0 0
        %1483 = vmatpush.bf16.xpose.msra.mxu0 0
        %1484 = vmatpush.bf16.xpose.msra.mxu0 0
        %1485 = vmatpush.bf16.xpose.msra.mxu0 %v1169
        %1486 = vmatmul.bf16.gmra.mxu0 %v1130
        %v1487 = vpop.f32.mrf.mxu0
        %v1488 = vadd.f32 0.0, %v1487
        %v1489 = vpop.f32.mrf.mxu0
        %1490 = vdwg.mxu0
        %1491 = vmatpush.bf16.xpose.msra.mxu0 0
        %1492 = vmatpush.bf16.xpose.msra.mxu0 0
        %1493 = vmatpush.bf16.xpose.msra.mxu0 0
        %1494 = vmatpush.bf16.xpose.msra.mxu0 0
        %1495 = vmatpush.bf16.xpose.msra.mxu0 0
        %1496 = vmatpush.bf16.xpose.msra.mxu0 0
        %1497 = vmatpush.bf16.xpose.msra.mxu0 0
        %1498 = vmatpush.bf16.xpose.msra.mxu0 %v1189
        %1499 = vmatmul.bf16.gmra.mxu0 %v1131
        %v1500 = vpop.f32.mrf.mxu0
        %v1501 = vadd.f32 0.0, %v1500
        %v1502 = vpop.f32.mrf.mxu0
        %1503 = vdwg.mxu0
        %1504 = vmatpush.bf16.xpose.msra.mxu0 0
        %1505 = vmatpush.bf16.xpose.msra.mxu0 0
        %1506 = vmatpush.bf16.xpose.msra.mxu0 0
        %1507 = vmatpush.bf16.xpose.msra.mxu0 0
        %1508 = vmatpush.bf16.xpose.msra.mxu0 0
        %1509 = vmatpush.bf16.xpose.msra.mxu0 0
        %1510 = vmatpush.bf16.xpose.msra.mxu0 0
        %1511 = vmatpush.bf16.xpose.msra.mxu0 %v1209
        %1512 = vmatmul.bf16.gmra.mxu0 %v1132
        %v1513 = vpop.f32.mrf.mxu0
        %v1514 = vadd.f32 0.0, %v1513
        %v1515 = vpop.f32.mrf.mxu0
        %1516 = vdwg.mxu0
        %1517 = vmatpush.bf16.xpose.msra.mxu0 0
        %1518 = vmatpush.bf16.xpose.msra.mxu0 0
        %1519 = vmatpush.bf16.xpose.msra.mxu0 0
        %1520 = vmatpush.bf16.xpose.msra.mxu0 0
        %1521 = vmatpush.bf16.xpose.msra.mxu0 0
        %1522 = vmatpush.bf16.xpose.msra.mxu0 0
        %1523 = vmatpush.bf16.xpose.msra.mxu0 0
        %1524 = vmatpush.bf16.xpose.msra.mxu0 %v1229
        %1525 = vmatmul.bf16.gmra.mxu0 %v1133
        %v1526 = vpop.f32.mrf.mxu0
        %v1527 = vadd.f32 0.0, %v1526
        %v1528 = vpop.f32.mrf.mxu0
        %1529 = vdwg.mxu0
        %1530 = vmatpush.bf16.xpose.msra.mxu0 0
        %1531 = vmatpush.bf16.xpose.msra.mxu0 0
        %1532 = vmatpush.bf16.xpose.msra.mxu0 0
        %1533 = vmatpush.bf16.xpose.msra.mxu0 0
        %1534 = vmatpush.bf16.xpose.msra.mxu0 0
        %1535 = vmatpush.bf16.xpose.msra.mxu0 0
        %1536 = vmatpush.bf16.xpose.msra.mxu0 0
        %1537 = vmatpush.bf16.xpose.msra.mxu0 %v1249
        %1538 = vmatmul.bf16.gmra.mxu0 %v1134
        %v1539 = vpop.f32.mrf.mxu0
        %v1540 = vadd.f32 0.0, %v1539
        %v1541 = vpop.f32.mrf.mxu0
        %1542 = vdwg.mxu0
        %1543 = vmatpush.bf16.xpose.msra.mxu0 0
        %1544 = vmatpush.bf16.xpose.msra.mxu0 0
        %1545 = vmatpush.bf16.xpose.msra.mxu0 0
        %1546 = vmatpush.bf16.xpose.msra.mxu0 0
        %1547 = vmatpush.bf16.xpose.msra.mxu0 0
        %1548 = vmatpush.bf16.xpose.msra.mxu0 0
        %1549 = vmatpush.bf16.xpose.msra.mxu0 0
        %1550 = vmatpush.bf16.xpose.msra.mxu0 %v1269
        %1551 = vmatmul.bf16.gmra.mxu0 %v1135
        %v1552 = vpop.f32.mrf.mxu0
        %v1553 = vadd.f32 0.0, %v1552
        %v1554 = vpop.f32.mrf.mxu0
        %1555 = vdwg.mxu0
        %1556 = vmatpush.bf16.xpose.msra.mxu0 0
        %1557 = vmatpush.bf16.xpose.msra.mxu0 0
        %1558 = vmatpush.bf16.xpose.msra.mxu0 0
        %1559 = vmatpush.bf16.xpose.msra.mxu0 0
        %1560 = vmatpush.bf16.xpose.msra.mxu0 0
        %1561 = vmatpush.bf16.xpose.msra.mxu0 0
        %1562 = vmatpush.bf16.xpose.msra.mxu0 0
        %1563 = vmatpush.bf16.xpose.msra.mxu0 %v1289
        %1564 = vmatmul.bf16.gmra.mxu0 %v1136
        %v1565 = vpop.f32.mrf.mxu0
        %v1566 = vadd.f32 0.0, %v1565
        %v1567 = vpop.f32.mrf.mxu0
        %1568 = vdwg.mxu0
        %1569 = vmatpush.bf16.xpose.msra.mxu0 0
        %1570 = vmatpush.bf16.xpose.msra.mxu0 0
        %1571 = vmatpush.bf16.xpose.msra.mxu0 0
        %1572 = vmatpush.bf16.xpose.msra.mxu0 0
        %1573 = vmatpush.bf16.xpose.msra.mxu0 0
        %1574 = vmatpush.bf16.xpose.msra.mxu0 0
        %1575 = vmatpush.bf16.xpose.msra.mxu0 0
        %1576 = vmatpush.bf16.xpose.msra.mxu0 %v1309
        %1577 = vmatmul.bf16.gmra.mxu0 %v1137
        %v1578 = vpop.f32.mrf.mxu0
        %v1579 = vadd.f32 0.0, %v1578
        %v1580 = vpop.f32.mrf.mxu0
        %1581 = vdwg.mxu0
        %1582 = vmatpush.bf16.xpose.msra.mxu0 0
        %1583 = vmatpush.bf16.xpose.msra.mxu0 0
        %1584 = vmatpush.bf16.xpose.msra.mxu0 0
        %1585 = vmatpush.bf16.xpose.msra.mxu0 0
        %1586 = vmatpush.bf16.xpose.msra.mxu0 0
        %1587 = vmatpush.bf16.xpose.msra.mxu0 0
        %1588 = vmatpush.bf16.xpose.msra.mxu0 0
        %1589 = vmatpush.bf16.xpose.msra.mxu0 %v1329
        %1590 = vmatmul.bf16.gmra.mxu0 %v1138
        %v1591 = vpop.f32.mrf.mxu0
        %v1592 = vadd.f32 0.0, %v1591
        %v1593 = vpop.f32.mrf.mxu0
        %1594 = vdwg.mxu0
        %1595 = vmatpush.bf16.xpose.msra.mxu0 0
        %1596 = vmatpush.bf16.xpose.msra.mxu0 0
        %1597 = vmatpush.bf16.xpose.msra.mxu0 0
        %1598 = vmatpush.bf16.xpose.msra.mxu0 0
        %1599 = vmatpush.bf16.xpose.msra.mxu0 0
        %1600 = vmatpush.bf16.xpose.msra.mxu0 0
        %1601 = vmatpush.bf16.xpose.msra.mxu0 0
        %1602 = vmatpush.bf16.xpose.msra.mxu0 %v1349
        %1603 = vmatmul.bf16.gmra.mxu0 %v1139
        %v1604 = vpop.f32.mrf.mxu0
        %v1605 = vadd.f32 0.0, %v1604
        %v1606 = vpop.f32.mrf.mxu0
        %1607 = vdwg.mxu0
        %1608 = vmatpush.bf16.xpose.msra.mxu0 0
        %1609 = vmatpush.bf16.xpose.msra.mxu0 0
        %1610 = vmatpush.bf16.xpose.msra.mxu0 0
        %1611 = vmatpush.bf16.xpose.msra.mxu0 0
        %1612 = vmatpush.bf16.xpose.msra.mxu0 0
        %1613 = vmatpush.bf16.xpose.msra.mxu0 0
        %1614 = vmatpush.bf16.xpose.msra.mxu0 0
        %1615 = vmatpush.bf16.xpose.msra.mxu0 %v1369
        %1616 = vmatmul.bf16.gmra.mxu0 %v1140
        %v1617 = vpop.f32.mrf.mxu0
        %v1618 = vadd.f32 0.0, %v1617
        %v1619 = vpop.f32.mrf.mxu0
        %1620 = vdwg.mxu0
        %1621 = vmatpush.bf16.xpose.msra.mxu0 0
        %1622 = vmatpush.bf16.xpose.msra.mxu0 0
        %1623 = vmatpush.bf16.xpose.msra.mxu0 0
        %1624 = vmatpush.bf16.xpose.msra.mxu0 0
        %1625 = vmatpush.bf16.xpose.msra.mxu0 0
        %1626 = vmatpush.bf16.xpose.msra.mxu0 0
        %1627 = vmatpush.bf16.xpose.msra.mxu0 0
        %1628 = vmatpush.bf16.xpose.msra.mxu0 %v1389
        %1629 = vmatmul.bf16.gmra.mxu0 %v1141
        %v1630 = vpop.f32.mrf.mxu0
        %v1631 = vadd.f32 0.0, %v1630
        %v1632 = vpop.f32.mrf.mxu0
        %1633 = vdwg.mxu0
        %1634 = vmatpush.bf16.xpose.msra.mxu0 0
        %1635 = vmatpush.bf16.xpose.msra.mxu0 0
        %1636 = vmatpush.bf16.xpose.msra.mxu0 0
        %1637 = vmatpush.bf16.xpose.msra.mxu0 0
        %1638 = vmatpush.bf16.xpose.msra.mxu0 0
        %1639 = vmatpush.bf16.xpose.msra.mxu0 0
        %1640 = vmatpush.bf16.xpose.msra.mxu0 0
        %1641 = vmatpush.bf16.xpose.msra.mxu0 %v1409
        %1642 = vmatmul.bf16.gmra.mxu0 %v1142
        %v1643 = vpop.f32.mrf.mxu0
        %v1644 = vadd.f32 0.0, %v1643
        %v1645 = vpop.f32.mrf.mxu0
        %1646 = vdwg.mxu0
        %1647 = vmatpush.bf16.xpose.msra.mxu0 0
        %1648 = vmatpush.bf16.xpose.msra.mxu0 0
        %1649 = vmatpush.bf16.xpose.msra.mxu0 0
        %1650 = vmatpush.bf16.xpose.msra.mxu0 0
        %1651 = vmatpush.bf16.xpose.msra.mxu0 0
        %1652 = vmatpush.bf16.xpose.msra.mxu0 0
        %1653 = vmatpush.bf16.xpose.msra.mxu0 0
        %1654 = vmatpush.bf16.xpose.msra.mxu0 %v1429
        %1655 = vmatmul.bf16.gmra.mxu0 %v1143
        %v1656 = vpop.f32.mrf.mxu0
        %v1657 = vadd.f32 0.0, %v1656
        %v1658 = vpop.f32.mrf.mxu0
        %1659 = vdwg.mxu0
        %1660 = vmatpush.bf16.xpose.msra.mxu0 0
        %1661 = vmatpush.bf16.xpose.msra.mxu0 0
        %1662 = vmatpush.bf16.xpose.msra.mxu0 0
        %1663 = vmatpush.bf16.xpose.msra.mxu0 0
        %1664 = vmatpush.bf16.xpose.msra.mxu0 0
        %1665 = vmatpush.bf16.xpose.msra.mxu0 0
        %1666 = vmatpush.bf16.xpose.msra.mxu0 0
        %1667 = vmatpush.bf16.xpose.msra.mxu0 %v1449
        %1668 = vmatmul.bf16.gmra.mxu0 %v1144
        %v1669 = vpop.f32.mrf.mxu0
        %v1670 = vadd.f32 0.0, %v1669
        %v1671 = vpop.f32.mrf.mxu0
        %1672 = vdwg.mxu0
        %vm1673 = vcmask 64512
        %v1674 = vsel %vm1673, %v1161, -inf
        %1675 = vmax.xlane.f32.xlu0 %v1674
        %v1676 = vpop.xlane.xlu0 %1675
        %v1677 = vsel %vm1673, %v1163, -inf
        %1678 = vmax.xlane.f32.xlu0 %v1677
        %v1679 = vpop.xlane.xlu0 %1678
        %v1680 = vsel %vm1673, %v1181, -inf
        %1681 = vmax.xlane.f32.xlu0 %v1680
        %v1682 = vpop.xlane.xlu0 %1681
        %v1683 = vsel %vm1673, %v1183, -inf
        %1684 = vmax.xlane.f32.xlu0 %v1683
        %v1685 = vpop.xlane.xlu0 %1684
        %v1686 = vsel %vm1673, %v1201, -inf
        %1687 = vmax.xlane.f32.xlu0 %v1686
        %v1688 = vpop.xlane.xlu0 %1687
        %v1689 = vsel %vm1673, %v1203, -inf
        %1690 = vmax.xlane.f32.xlu0 %v1689
        %v1691 = vpop.xlane.xlu0 %1690
        %v1692 = vsel %vm1673, %v1221, -inf
        %1693 = vmax.xlane.f32.xlu0 %v1692
        %v1694 = vpop.xlane.xlu0 %1693
        %v1695 = vsel %vm1673, %v1223, -inf
        %1696 = vmax.xlane.f32.xlu0 %v1695
        %v1697 = vpop.xlane.xlu0 %1696
        %v1698 = vsel %vm1673, %v1241, -inf
        %1699 = vmax.xlane.f32.xlu0 %v1698
        %v1700 = vpop.xlane.xlu0 %1699
        %v1701 = vsel %vm1673, %v1243, -inf
        %1702 = vmax.xlane.f32.xlu0 %v1701
        %v1703 = vpop.xlane.xlu0 %1702
        %v1704 = vsel %vm1673, %v1261, -inf
        %1705 = vmax.xlane.f32.xlu0 %v1704
        %v1706 = vpop.xlane.xlu0 %1705
        %v1707 = vsel %vm1673, %v1263, -inf
        %1708 = vmax.xlane.f32.xlu0 %v1707
        %v1709 = vpop.xlane.xlu0 %1708
        %v1710 = vsel %vm1673, %v1281, -inf
        %1711 = vmax.xlane.f32.xlu0 %v1710
        %v1712 = vpop.xlane.xlu0 %1711
        %v1713 = vsel %vm1673, %v1283, -inf
        %1714 = vmax.xlane.f32.xlu0 %v1713
        %v1715 = vpop.xlane.xlu0 %1714
        %v1716 = vsel %vm1673, %v1301, -inf
        %1717 = vmax.xlane.f32.xlu0 %v1716
        %v1718 = vpop.xlane.xlu0 %1717
        %v1719 = vsel %vm1673, %v1303, -inf
        %1720 = vmax.xlane.f32.xlu0 %v1719
        %v1721 = vpop.xlane.xlu0 %1720
        %v1722 = vsel %vm1673, %v1321, -inf
        %1723 = vmax.xlane.f32.xlu0 %v1722
        %v1724 = vpop.xlane.xlu0 %1723
        %v1725 = vsel %vm1673, %v1323, -inf
        %1726 = vmax.xlane.f32.xlu0 %v1725
        %v1727 = vpop.xlane.xlu0 %1726
        %v1728 = vsel %vm1673, %v1341, -inf
        %1729 = vmax.xlane.f32.xlu0 %v1728
        %v1730 = vpop.xlane.xlu0 %1729
        %v1731 = vsel %vm1673, %v1343, -inf
        %1732 = vmax.xlane.f32.xlu0 %v1731
        %v1733 = vpop.xlane.xlu0 %1732
        %v1734 = vsel %vm1673, %v1361, -inf
        %1735 = vmax.xlane.f32.xlu0 %v1734
        %v1736 = vpop.xlane.xlu0 %1735
        %v1737 = vsel %vm1673, %v1363, -inf
        %1738 = vmax.xlane.f32.xlu0 %v1737
        %v1739 = vpop.xlane.xlu0 %1738
        %v1740 = vsel %vm1673, %v1381, -inf
        %1741 = vmax.xlane.f32.xlu0 %v1740
        %v1742 = vpop.xlane.xlu0 %1741
        %v1743 = vsel %vm1673, %v1383, -inf
        %1744 = vmax.xlane.f32.xlu0 %v1743
        %v1745 = vpop.xlane.xlu0 %1744
        %v1746 = vsel %vm1673, %v1401, -inf
        %1747 = vmax.xlane.f32.xlu0 %v1746
        %v1748 = vpop.xlane.xlu0 %1747
        %v1749 = vsel %vm1673, %v1403, -inf
        %1750 = vmax.xlane.f32.xlu0 %v1749
        %v1751 = vpop.xlane.xlu0 %1750
        %v1752 = vsel %vm1673, %v1421, -inf
        %1753 = vmax.xlane.f32.xlu0 %v1752
        %v1754 = vpop.xlane.xlu0 %1753
        %v1755 = vsel %vm1673, %v1423, -inf
        %1756 = vmax.xlane.f32.xlu0 %v1755
        %v1757 = vpop.xlane.xlu0 %1756
        %v1758 = vsel %vm1673, %v1441, -inf
        %1759 = vmax.xlane.f32.xlu0 %v1758
        %v1760 = vpop.xlane.xlu0 %1759
        %v1761 = vsel %vm1673, %v1443, -inf
        %1762 = vmax.xlane.f32.xlu0 %v1761
        %v1763 = vpop.xlane.xlu0 %1762
        %v1764 = vsel %vm1673, %v1461, -inf
        %1765 = vmax.xlane.f32.xlu0 %v1764
        %v1766 = vpop.xlane.xlu0 %1765
        %v1767 = vsel %vm1673, %v1463, -inf
        %1768 = vmax.xlane.f32.xlu0 %v1767
        %v1769 = vpop.xlane.xlu0 %1768
        %v1770 = vsub.f32 %v1161, %v1676
        %v1771 = vsub.f32 %v1163, %v1679
        %v1772 = vsub.f32 %v1181, %v1682
        %v1773 = vsub.f32 %v1183, %v1685
        %v1774 = vsub.f32 %v1201, %v1688
        %v1775 = vsub.f32 %v1203, %v1691
        %v1776 = vsub.f32 %v1221, %v1694
        %v1777 = vsub.f32 %v1223, %v1697
        %v1778 = vsub.f32 %v1241, %v1700
        %v1779 = vsub.f32 %v1243, %v1703
        %v1780 = vsub.f32 %v1261, %v1706
        %v1781 = vsub.f32 %v1263, %v1709
        %v1782 = vsub.f32 %v1281, %v1712
        %v1783 = vsub.f32 %v1283, %v1715
        %v1784 = vsub.f32 %v1301, %v1718
        %v1785 = vsub.f32 %v1303, %v1721
        %v1786 = vsub.f32 %v1321, %v1724
        %v1787 = vsub.f32 %v1323, %v1727
        %v1788 = vsub.f32 %v1341, %v1730
        %v1789 = vsub.f32 %v1343, %v1733
        %v1790 = vsub.f32 %v1361, %v1736
        %v1791 = vsub.f32 %v1363, %v1739
        %v1792 = vsub.f32 %v1381, %v1742
        %v1793 = vsub.f32 %v1383, %v1745
        %v1794 = vsub.f32 %v1401, %v1748
        %v1795 = vsub.f32 %v1403, %v1751
        %v1796 = vsub.f32 %v1421, %v1754
        %v1797 = vsub.f32 %v1423, %v1757
        %v1798 = vsub.f32 %v1441, %v1760
        %v1799 = vsub.f32 %v1443, %v1763
        %v1800 = vsub.f32 %v1461, %v1766
        %v1801 = vsub.f32 %v1463, %v1769
        %v1802 = vmul.f32 %v1770, 1.442695
        %v1803 = vpow.pop %v1802
        %v1804 = vmul.f32 %v1771, 1.442695
        %v1805 = vpow.pop %v1804
        %v1806 = vmul.f32 %v1772, 1.442695
        %v1807 = vpow.pop %v1806
        %v1808 = vmul.f32 %v1773, 1.442695
        %v1809 = vpow.pop %v1808
        %v1810 = vmul.f32 %v1774, 1.442695
        %v1811 = vpow.pop %v1810
        %v1812 = vmul.f32 %v1775, 1.442695
        %v1813 = vpow.pop %v1812
        %v1814 = vmul.f32 %v1776, 1.442695
        %v1815 = vpow.pop %v1814
        %v1816 = vmul.f32 %v1777, 1.442695
        %v1817 = vpow.pop %v1816
        %v1818 = vmul.f32 %v1778, 1.442695
        %v1819 = vpow.pop %v1818
        %v1820 = vmul.f32 %v1779, 1.442695
        %v1821 = vpow.pop %v1820
        %v1822 = vmul.f32 %v1780, 1.442695
        %v1823 = vpow.pop %v1822
        %v1824 = vmul.f32 %v1781, 1.442695
        %v1825 = vpow.pop %v1824
        %v1826 = vmul.f32 %v1782, 1.442695
        %v1827 = vpow.pop %v1826
        %v1828 = vmul.f32 %v1783, 1.442695
        %v1829 = vpow.pop %v1828
        %v1830 = vmul.f32 %v1784, 1.442695
        %v1831 = vpow.pop %v1830
        %v1832 = vmul.f32 %v1785, 1.442695
        %v1833 = vpow.pop %v1832
        %v1834 = vmul.f32 %v1786, 1.442695
        %v1835 = vpow.pop %v1834
        %v1836 = vmul.f32 %v1787, 1.442695
        %v1837 = vpow.pop %v1836
        %v1838 = vmul.f32 %v1788, 1.442695
        %v1839 = vpow.pop %v1838
        %v1840 = vmul.f32 %v1789, 1.442695
        %v1841 = vpow.pop %v1840
        %v1842 = vmul.f32 %v1790, 1.442695
        %v1843 = vpow.pop %v1842
        %v1844 = vmul.f32 %v1791, 1.442695
        %v1845 = vpow.pop %v1844
        %v1846 = vmul.f32 %v1792, 1.442695
        %v1847 = vpow.pop %v1846
        %v1848 = vmul.f32 %v1793, 1.442695
        %v1849 = vpow.pop %v1848
        %v1850 = vmul.f32 %v1794, 1.442695
        %v1851 = vpow.pop %v1850
        %v1852 = vmul.f32 %v1795, 1.442695
        %v1853 = vpow.pop %v1852
        %v1854 = vmul.f32 %v1796, 1.442695
        %v1855 = vpow.pop %v1854
        %v1856 = vmul.f32 %v1797, 1.442695
        %v1857 = vpow.pop %v1856
        %v1858 = vmul.f32 %v1798, 1.442695
        %v1859 = vpow.pop %v1858
        %v1860 = vmul.f32 %v1799, 1.442695
        %v1861 = vpow.pop %v1860
        %v1862 = vmul.f32 %v1800, 1.442695
        %v1863 = vpow.pop %v1862
        %v1864 = vmul.f32 %v1801, 1.442695
        %v1865 = vpow.pop %v1864
        %v1866 = vsel %vm1673, %v1803, 0.0
        %1867 = vadd.xlane.f32.xlu0 %v1866
        %v1868 = vpop.xlane.xlu0 %1867
        %v1869 = vsel %vm1673, %v1805, 0.0
        %1870 = vadd.xlane.f32.xlu0 %v1869
        %v1871 = vpop.xlane.xlu0 %1870
        %v1872 = vsel %vm1673, %v1807, 0.0
        %1873 = vadd.xlane.f32.xlu0 %v1872
        %v1874 = vpop.xlane.xlu0 %1873
        %v1875 = vsel %vm1673, %v1809, 0.0
        %1876 = vadd.xlane.f32.xlu0 %v1875
        %v1877 = vpop.xlane.xlu0 %1876
        %v1878 = vsel %vm1673, %v1811, 0.0
        %1879 = vadd.xlane.f32.xlu0 %v1878
        %v1880 = vpop.xlane.xlu0 %1879
        %v1881 = vsel %vm1673, %v1813, 0.0
        %1882 = vadd.xlane.f32.xlu0 %v1881
        %v1883 = vpop.xlane.xlu0 %1882
        %v1884 = vsel %vm1673, %v1815, 0.0
        %1885 = vadd.xlane.f32.xlu0 %v1884
        %v1886 = vpop.xlane.xlu0 %1885
        %v1887 = vsel %vm1673, %v1817, 0.0
        %1888 = vadd.xlane.f32.xlu0 %v1887
        %v1889 = vpop.xlane.xlu0 %1888
        %v1890 = vsel %vm1673, %v1819, 0.0
        %1891 = vadd.xlane.f32.xlu0 %v1890
        %v1892 = vpop.xlane.xlu0 %1891
        %v1893 = vsel %vm1673, %v1821, 0.0
        %1894 = vadd.xlane.f32.xlu0 %v1893
        %v1895 = vpop.xlane.xlu0 %1894
        %v1896 = vsel %vm1673, %v1823, 0.0
        %1897 = vadd.xlane.f32.xlu0 %v1896
        %v1898 = vpop.xlane.xlu0 %1897
        %v1899 = vsel %vm1673, %v1825, 0.0
        %1900 = vadd.xlane.f32.xlu0 %v1899
        %v1901 = vpop.xlane.xlu0 %1900
        %v1902 = vsel %vm1673, %v1827, 0.0
        %1903 = vadd.xlane.f32.xlu0 %v1902
        %v1904 = vpop.xlane.xlu0 %1903
        %v1905 = vsel %vm1673, %v1829, 0.0
        %1906 = vadd.xlane.f32.xlu0 %v1905
        %v1907 = vpop.xlane.xlu0 %1906
        %v1908 = vsel %vm1673, %v1831, 0.0
        %1909 = vadd.xlane.f32.xlu0 %v1908
        %v1910 = vpop.xlane.xlu0 %1909
        %v1911 = vsel %vm1673, %v1833, 0.0
        %1912 = vadd.xlane.f32.xlu0 %v1911
        %v1913 = vpop.xlane.xlu0 %1912
        %v1914 = vsel %vm1673, %v1835, 0.0
        %1915 = vadd.xlane.f32.xlu0 %v1914
        %v1916 = vpop.xlane.xlu0 %1915
        %v1917 = vsel %vm1673, %v1837, 0.0
        %1918 = vadd.xlane.f32.xlu0 %v1917
        %v1919 = vpop.xlane.xlu0 %1918
        %v1920 = vsel %vm1673, %v1839, 0.0
        %1921 = vadd.xlane.f32.xlu0 %v1920
        %v1922 = vpop.xlane.xlu0 %1921
        %v1923 = vsel %vm1673, %v1841, 0.0
        %1924 = vadd.xlane.f32.xlu0 %v1923
        %v1925 = vpop.xlane.xlu0 %1924
        %v1926 = vsel %vm1673, %v1843, 0.0
        %1927 = vadd.xlane.f32.xlu0 %v1926
        %v1928 = vpop.xlane.xlu0 %1927
        %v1929 = vsel %vm1673, %v1845, 0.0
        %1930 = vadd.xlane.f32.xlu0 %v1929
        %v1931 = vpop.xlane.xlu0 %1930
        %v1932 = vsel %vm1673, %v1847, 0.0
        %1933 = vadd.xlane.f32.xlu0 %v1932
        %v1934 = vpop.xlane.xlu0 %1933
        %v1935 = vsel %vm1673, %v1849, 0.0
        %1936 = vadd.xlane.f32.xlu0 %v1935
        %v1937 = vpop.xlane.xlu0 %1936
        %v1938 = vsel %vm1673, %v1851, 0.0
        %1939 = vadd.xlane.f32.xlu0 %v1938
        %v1940 = vpop.xlane.xlu0 %1939
        %v1941 = vsel %vm1673, %v1853, 0.0
        %1942 = vadd.xlane.f32.xlu0 %v1941
        %v1943 = vpop.xlane.xlu0 %1942
        %v1944 = vsel %vm1673, %v1855, 0.0
        %1945 = vadd.xlane.f32.xlu0 %v1944
        %v1946 = vpop.xlane.xlu0 %1945
        %v1947 = vsel %vm1673, %v1857, 0.0
        %1948 = vadd.xlane.f32.xlu0 %v1947
        %v1949 = vpop.xlane.xlu0 %1948
        %v1950 = vsel %vm1673, %v1859, 0.0
        %1951 = vadd.xlane.f32.xlu0 %v1950
        %v1952 = vpop.xlane.xlu0 %1951
        %v1953 = vsel %vm1673, %v1861, 0.0
        %1954 = vadd.xlane.f32.xlu0 %v1953
        %v1955 = vpop.xlane.xlu0 %1954
        %v1956 = vsel %vm1673, %v1863, 0.0
        %1957 = vadd.xlane.f32.xlu0 %v1956
        %v1958 = vpop.xlane.xlu0 %1957
        %v1959 = vsel %vm1673, %v1865, 0.0
        %1960 = vadd.xlane.f32.xlu0 %v1959
        %v1961 = vpop.xlane.xlu0 %1960
        %v1962 = vrcp.pop %v1868
        %v1963 = vrcp.pop %v1871
        %v1964 = vrcp.pop %v1874
        %v1965 = vrcp.pop %v1877
        %v1966 = vrcp.pop %v1880
        %v1967 = vrcp.pop %v1883
        %v1968 = vrcp.pop %v1886
        %v1969 = vrcp.pop %v1889
        %v1970 = vrcp.pop %v1892
        %v1971 = vrcp.pop %v1895
        %v1972 = vrcp.pop %v1898
        %v1973 = vrcp.pop %v1901
        %v1974 = vrcp.pop %v1904
        %v1975 = vrcp.pop %v1907
        %v1976 = vrcp.pop %v1910
        %v1977 = vrcp.pop %v1913
        %v1978 = vrcp.pop %v1916
        %v1979 = vrcp.pop %v1919
        %v1980 = vrcp.pop %v1922
        %v1981 = vrcp.pop %v1925
        %v1982 = vrcp.pop %v1928
        %v1983 = vrcp.pop %v1931
        %v1984 = vrcp.pop %v1934
        %v1985 = vrcp.pop %v1937
        %v1986 = vrcp.pop %v1940
        %v1987 = vrcp.pop %v1943
        %v1988 = vrcp.pop %v1946
        %v1989 = vrcp.pop %v1949
        %v1990 = vrcp.pop %v1952
        %v1991 = vrcp.pop %v1955
        %v1992 = vrcp.pop %v1958
        %v1993 = vrcp.pop %v1961
        %v1994 = vmul.f32 %v1803, %v1962
        %v1995 = vmul.f32 %v1805, %v1963
        %v1996 = vmul.f32 %v1807, %v1964
        %v1997 = vmul.f32 %v1809, %v1965
        %v1998 = vmul.f32 %v1811, %v1966
        %v1999 = vmul.f32 %v1813, %v1967
        %v2000 = vmul.f32 %v1815, %v1968
        %v2001 = vmul.f32 %v1817, %v1969
        %v2002 = vmul.f32 %v1819, %v1970
        %v2003 = vmul.f32 %v1821, %v1971
        %v2004 = vmul.f32 %v1823, %v1972
        %v2005 = vmul.f32 %v1825, %v1973
        %v2006 = vmul.f32 %v1827, %v1974
        %v2007 = vmul.f32 %v1829, %v1975
        %v2008 = vmul.f32 %v1831, %v1976
        %v2009 = vmul.f32 %v1833, %v1977
        %v2010 = vmul.f32 %v1835, %v1978
        %v2011 = vmul.f32 %v1837, %v1979
        %v2012 = vmul.f32 %v1839, %v1980
        %v2013 = vmul.f32 %v1841, %v1981
        %v2014 = vmul.f32 %v1843, %v1982
        %v2015 = vmul.f32 %v1845, %v1983
        %v2016 = vmul.f32 %v1847, %v1984
        %v2017 = vmul.f32 %v1849, %v1985
        %v2018 = vmul.f32 %v1851, %v1986
        %v2019 = vmul.f32 %v1853, %v1987
        %v2020 = vmul.f32 %v1855, %v1988
        %v2021 = vmul.f32 %v1857, %v1989
        %v2022 = vmul.f32 %v1859, %v1990
        %v2023 = vmul.f32 %v1861, %v1991
        %v2024 = vmul.f32 %v1863, %v1992
        %v2025 = vmul.f32 %v1865, %v1993
        %v2026 = vpack.c.bf16 %v1994, %v1994
        %v2027 = vpack.c.bf16 %v1995, %v1995
        %v2028 = vpack.c.bf16 %v1996, %v1996
        %v2029 = vpack.c.bf16 %v1997, %v1997
        %v2030 = vpack.c.bf16 %v1998, %v1998
        %v2031 = vpack.c.bf16 %v1999, %v1999
        %v2032 = vpack.c.bf16 %v2000, %v2000
        %v2033 = vpack.c.bf16 %v2001, %v2001
        %v2034 = vpack.c.bf16 %v2002, %v2002
        %v2035 = vpack.c.bf16 %v2003, %v2003
        %v2036 = vpack.c.bf16 %v2004, %v2004
        %v2037 = vpack.c.bf16 %v2005, %v2005
        %v2038 = vpack.c.bf16 %v2006, %v2006
        %v2039 = vpack.c.bf16 %v2007, %v2007
        %v2040 = vpack.c.bf16 %v2008, %v2008
        %v2041 = vpack.c.bf16 %v2009, %v2009
        %v2042 = vpack.c.bf16 %v2010, %v2010
        %v2043 = vpack.c.bf16 %v2011, %v2011
        %v2044 = vpack.c.bf16 %v2012, %v2012
        %v2045 = vpack.c.bf16 %v2013, %v2013
        %v2046 = vpack.c.bf16 %v2014, %v2014
        %v2047 = vpack.c.bf16 %v2015, %v2015
        %v2048 = vpack.c.bf16 %v2016, %v2016
        %v2049 = vpack.c.bf16 %v2017, %v2017
        %v2050 = vpack.c.bf16 %v2018, %v2018
        %v2051 = vpack.c.bf16 %v2019, %v2019
        %v2052 = vpack.c.bf16 %v2020, %v2020
        %v2053 = vpack.c.bf16 %v2021, %v2021
        %v2054 = vpack.c.bf16 %v2022, %v2022
        %v2055 = vpack.c.bf16 %v2023, %v2023
        %v2056 = vpack.c.bf16 %v2024, %v2024
        %v2057 = vpack.c.bf16 %v2025, %v2025
        %v2060 = vunpack.c.l.b16 %v2026
        %v2061 = vunpack.c.l.b16 %v2027
        %v2062 = vpack.c.b16 %v2061, %v2060
        %v2064 = vsel %vm1673, %v2062, 0
        %vm2066 = vcmask 1043456
        %v2068 = vsel %vm2066, %v423, 0
        %2070 = vmatpush.bf16.msra.mxu0 0
        %2071 = vmatpush.bf16.msra.mxu0 0
        %2072 = vmatpush.bf16.msra.mxu0 0
        %2073 = vmatpush.bf16.msra.mxu0 0
        %2074 = vmatpush.bf16.msra.mxu0 0
        %2075 = vmatpush.bf16.msra.mxu0 0
        %2076 = vmatpush.bf16.msra.mxu0 0
        %2077 = vmatpush.bf16.msra.mxu0 %v2068
        %2078 = vmatmul.bf16.gmra.mxu0 %v2064
        %v2079 = vpop.f32.mrf.mxu0
        %v2080 = vadd.f32 0.0, %v2079
        %v2081 = vpop.f32.mrf.mxu0
        %v2082 = vadd.f32 0.0, %v2081
        %2083 = vdwg.mxu0
        %v2086 = vunpack.c.l.b16 %v2028
        %v2087 = vunpack.c.l.b16 %v2029
        %v2088 = vpack.c.b16 %v2087, %v2086
        %v2090 = vsel %vm1673, %v2088, 0
        %v2093 = vsel %vm2066, %v424, 0
        %2095 = vmatpush.bf16.msra.mxu0 0
        %2096 = vmatpush.bf16.msra.mxu0 0
        %2097 = vmatpush.bf16.msra.mxu0 0
        %2098 = vmatpush.bf16.msra.mxu0 0
        %2099 = vmatpush.bf16.msra.mxu0 0
        %2100 = vmatpush.bf16.msra.mxu0 0
        %2101 = vmatpush.bf16.msra.mxu0 0
        %2102 = vmatpush.bf16.msra.mxu0 %v2093
        %2103 = vmatmul.bf16.gmra.mxu0 %v2090
        %v2104 = vpop.f32.mrf.mxu0
        %v2105 = vadd.f32 0.0, %v2104
        %v2106 = vpop.f32.mrf.mxu0
        %v2107 = vadd.f32 0.0, %v2106
        %2108 = vdwg.mxu0
        %v2111 = vunpack.c.l.b16 %v2030
        %v2112 = vunpack.c.l.b16 %v2031
        %v2113 = vpack.c.b16 %v2112, %v2111
        %v2115 = vsel %vm1673, %v2113, 0
        %v2118 = vsel %vm2066, %v425, 0
        %2120 = vmatpush.bf16.msra.mxu0 0
        %2121 = vmatpush.bf16.msra.mxu0 0
        %2122 = vmatpush.bf16.msra.mxu0 0
        %2123 = vmatpush.bf16.msra.mxu0 0
        %2124 = vmatpush.bf16.msra.mxu0 0
        %2125 = vmatpush.bf16.msra.mxu0 0
        %2126 = vmatpush.bf16.msra.mxu0 0
        %2127 = vmatpush.bf16.msra.mxu0 %v2118
        %2128 = vmatmul.bf16.gmra.mxu0 %v2115
        %v2129 = vpop.f32.mrf.mxu0
        %v2130 = vadd.f32 0.0, %v2129
        %v2131 = vpop.f32.mrf.mxu0
        %v2132 = vadd.f32 0.0, %v2131
        %2133 = vdwg.mxu0
        %v2136 = vunpack.c.l.b16 %v2032
        %v2137 = vunpack.c.l.b16 %v2033
        %v2138 = vpack.c.b16 %v2137, %v2136
        %v2140 = vsel %vm1673, %v2138, 0
        %v2143 = vsel %vm2066, %v426, 0
        %2145 = vmatpush.bf16.msra.mxu0 0
        %2146 = vmatpush.bf16.msra.mxu0 0
        %2147 = vmatpush.bf16.msra.mxu0 0
        %2148 = vmatpush.bf16.msra.mxu0 0
        %2149 = vmatpush.bf16.msra.mxu0 0
        %2150 = vmatpush.bf16.msra.mxu0 0
        %2151 = vmatpush.bf16.msra.mxu0 0
        %2152 = vmatpush.bf16.msra.mxu0 %v2143
        %2153 = vmatmul.bf16.gmra.mxu0 %v2140
        %v2154 = vpop.f32.mrf.mxu0
        %v2155 = vadd.f32 0.0, %v2154
        %v2156 = vpop.f32.mrf.mxu0
        %v2157 = vadd.f32 0.0, %v2156
        %2158 = vdwg.mxu0
        %v2161 = vunpack.c.l.b16 %v2034
        %v2162 = vunpack.c.l.b16 %v2035
        %v2163 = vpack.c.b16 %v2162, %v2161
        %v2165 = vsel %vm1673, %v2163, 0
        %v2168 = vsel %vm2066, %v427, 0
        %2170 = vmatpush.bf16.msra.mxu0 0
        %2171 = vmatpush.bf16.msra.mxu0 0
        %2172 = vmatpush.bf16.msra.mxu0 0
        %2173 = vmatpush.bf16.msra.mxu0 0
        %2174 = vmatpush.bf16.msra.mxu0 0
        %2175 = vmatpush.bf16.msra.mxu0 0
        %2176 = vmatpush.bf16.msra.mxu0 0
        %2177 = vmatpush.bf16.msra.mxu0 %v2168
        %2178 = vmatmul.bf16.gmra.mxu0 %v2165
        %v2179 = vpop.f32.mrf.mxu0
        %v2180 = vadd.f32 0.0, %v2179
        %v2181 = vpop.f32.mrf.mxu0
        %v2182 = vadd.f32 0.0, %v2181
        %2183 = vdwg.mxu0
        %v2186 = vunpack.c.l.b16 %v2036
        %v2187 = vunpack.c.l.b16 %v2037
        %v2188 = vpack.c.b16 %v2187, %v2186
        %v2190 = vsel %vm1673, %v2188, 0
        %v2193 = vsel %vm2066, %v428, 0
        %2195 = vmatpush.bf16.msra.mxu0 0
        %2196 = vmatpush.bf16.msra.mxu0 0
        %2197 = vmatpush.bf16.msra.mxu0 0
        %2198 = vmatpush.bf16.msra.mxu0 0
        %2199 = vmatpush.bf16.msra.mxu0 0
        %2200 = vmatpush.bf16.msra.mxu0 0
        %2201 = vmatpush.bf16.msra.mxu0 0
        %2202 = vmatpush.bf16.msra.mxu0 %v2193
        %2203 = vmatmul.bf16.gmra.mxu0 %v2190
        %v2204 = vpop.f32.mrf.mxu0
        %v2205 = vadd.f32 0.0, %v2204
        %v2206 = vpop.f32.mrf.mxu0
        %v2207 = vadd.f32 0.0, %v2206
        %2208 = vdwg.mxu0
        %v2211 = vunpack.c.l.b16 %v2038
        %v2212 = vunpack.c.l.b16 %v2039
        %v2213 = vpack.c.b16 %v2212, %v2211
        %v2215 = vsel %vm1673, %v2213, 0
        %v2218 = vsel %vm2066, %v429, 0
        %2220 = vmatpush.bf16.msra.mxu0 0
        %2221 = vmatpush.bf16.msra.mxu0 0
        %2222 = vmatpush.bf16.msra.mxu0 0
        %2223 = vmatpush.bf16.msra.mxu0 0
        %2224 = vmatpush.bf16.msra.mxu0 0
        %2225 = vmatpush.bf16.msra.mxu0 0
        %2226 = vmatpush.bf16.msra.mxu0 0
        %2227 = vmatpush.bf16.msra.mxu0 %v2218
        %2228 = vmatmul.bf16.gmra.mxu0 %v2215
        %v2229 = vpop.f32.mrf.mxu0
        %v2230 = vadd.f32 0.0, %v2229
        %v2231 = vpop.f32.mrf.mxu0
        %v2232 = vadd.f32 0.0, %v2231
        %2233 = vdwg.mxu0
        %v2236 = vunpack.c.l.b16 %v2040
        %v2237 = vunpack.c.l.b16 %v2041
        %v2238 = vpack.c.b16 %v2237, %v2236
        %v2240 = vsel %vm1673, %v2238, 0
        %v2243 = vsel %vm2066, %v430, 0
        %2245 = vmatpush.bf16.msra.mxu0 0
        %2246 = vmatpush.bf16.msra.mxu0 0
        %2247 = vmatpush.bf16.msra.mxu0 0
        %2248 = vmatpush.bf16.msra.mxu0 0
        %2249 = vmatpush.bf16.msra.mxu0 0
        %2250 = vmatpush.bf16.msra.mxu0 0
        %2251 = vmatpush.bf16.msra.mxu0 0
        %2252 = vmatpush.bf16.msra.mxu0 %v2243
        %2253 = vmatmul.bf16.gmra.mxu0 %v2240
        %v2254 = vpop.f32.mrf.mxu0
        %v2255 = vadd.f32 0.0, %v2254
        %v2256 = vpop.f32.mrf.mxu0
        %v2257 = vadd.f32 0.0, %v2256
        %2258 = vdwg.mxu0
        %v2261 = vunpack.c.l.b16 %v2042
        %v2262 = vunpack.c.l.b16 %v2043
        %v2263 = vpack.c.b16 %v2262, %v2261
        %v2265 = vsel %vm1673, %v2263, 0
        %v2268 = vsel %vm2066, %v431, 0
        %2270 = vmatpush.bf16.msra.mxu0 0
        %2271 = vmatpush.bf16.msra.mxu0 0
        %2272 = vmatpush.bf16.msra.mxu0 0
        %2273 = vmatpush.bf16.msra.mxu0 0
        %2274 = vmatpush.bf16.msra.mxu0 0
        %2275 = vmatpush.bf16.msra.mxu0 0
        %2276 = vmatpush.bf16.msra.mxu0 0
        %2277 = vmatpush.bf16.msra.mxu0 %v2268
        %2278 = vmatmul.bf16.gmra.mxu0 %v2265
        %v2279 = vpop.f32.mrf.mxu0
        %v2280 = vadd.f32 0.0, %v2279
        %v2281 = vpop.f32.mrf.mxu0
        %v2282 = vadd.f32 0.0, %v2281
        %2283 = vdwg.mxu0
        %v2286 = vunpack.c.l.b16 %v2044
        %v2287 = vunpack.c.l.b16 %v2045
        %v2288 = vpack.c.b16 %v2287, %v2286
        %v2290 = vsel %vm1673, %v2288, 0
        %v2293 = vsel %vm2066, %v432, 0
        %2295 = vmatpush.bf16.msra.mxu0 0
        %2296 = vmatpush.bf16.msra.mxu0 0
        %2297 = vmatpush.bf16.msra.mxu0 0
        %2298 = vmatpush.bf16.msra.mxu0 0
        %2299 = vmatpush.bf16.msra.mxu0 0
        %2300 = vmatpush.bf16.msra.mxu0 0
        %2301 = vmatpush.bf16.msra.mxu0 0
        %2302 = vmatpush.bf16.msra.mxu0 %v2293
        %2303 = vmatmul.bf16.gmra.mxu0 %v2290
        %v2304 = vpop.f32.mrf.mxu0
        %v2305 = vadd.f32 0.0, %v2304
        %v2306 = vpop.f32.mrf.mxu0
        %v2307 = vadd.f32 0.0, %v2306
        %2308 = vdwg.mxu0
        %v2311 = vunpack.c.l.b16 %v2046
        %v2312 = vunpack.c.l.b16 %v2047
        %v2313 = vpack.c.b16 %v2312, %v2311
        %v2315 = vsel %vm1673, %v2313, 0
        %v2318 = vsel %vm2066, %v433, 0
        %2320 = vmatpush.bf16.msra.mxu0 0
        %2321 = vmatpush.bf16.msra.mxu0 0
        %2322 = vmatpush.bf16.msra.mxu0 0
        %2323 = vmatpush.bf16.msra.mxu0 0
        %2324 = vmatpush.bf16.msra.mxu0 0
        %2325 = vmatpush.bf16.msra.mxu0 0
        %2326 = vmatpush.bf16.msra.mxu0 0
        %2327 = vmatpush.bf16.msra.mxu0 %v2318
        %2328 = vmatmul.bf16.gmra.mxu0 %v2315
        %v2329 = vpop.f32.mrf.mxu0
        %v2330 = vadd.f32 0.0, %v2329
        %v2331 = vpop.f32.mrf.mxu0
        %v2332 = vadd.f32 0.0, %v2331
        %2333 = vdwg.mxu0
        %v2336 = vunpack.c.l.b16 %v2048
        %v2337 = vunpack.c.l.b16 %v2049
        %v2338 = vpack.c.b16 %v2337, %v2336
        %v2340 = vsel %vm1673, %v2338, 0
        %v2343 = vsel %vm2066, %v434, 0
        %2345 = vmatpush.bf16.msra.mxu0 0
        %2346 = vmatpush.bf16.msra.mxu0 0
        %2347 = vmatpush.bf16.msra.mxu0 0
        %2348 = vmatpush.bf16.msra.mxu0 0
        %2349 = vmatpush.bf16.msra.mxu0 0
        %2350 = vmatpush.bf16.msra.mxu0 0
        %2351 = vmatpush.bf16.msra.mxu0 0
        %2352 = vmatpush.bf16.msra.mxu0 %v2343
        %2353 = vmatmul.bf16.gmra.mxu0 %v2340
        %v2354 = vpop.f32.mrf.mxu0
        %v2355 = vadd.f32 0.0, %v2354
        %v2356 = vpop.f32.mrf.mxu0
        %v2357 = vadd.f32 0.0, %v2356
        %2358 = vdwg.mxu0
        %v2361 = vunpack.c.l.b16 %v2050
        %v2362 = vunpack.c.l.b16 %v2051
        %v2363 = vpack.c.b16 %v2362, %v2361
        %v2365 = vsel %vm1673, %v2363, 0
        %v2368 = vsel %vm2066, %v435, 0
        %2370 = vmatpush.bf16.msra.mxu0 0
        %2371 = vmatpush.bf16.msra.mxu0 0
        %2372 = vmatpush.bf16.msra.mxu0 0
        %2373 = vmatpush.bf16.msra.mxu0 0
        %2374 = vmatpush.bf16.msra.mxu0 0
        %2375 = vmatpush.bf16.msra.mxu0 0
        %2376 = vmatpush.bf16.msra.mxu0 0
        %2377 = vmatpush.bf16.msra.mxu0 %v2368
        %2378 = vmatmul.bf16.gmra.mxu0 %v2365
        %v2379 = vpop.f32.mrf.mxu0
        %v2380 = vadd.f32 0.0, %v2379
        %v2381 = vpop.f32.mrf.mxu0
        %v2382 = vadd.f32 0.0, %v2381
        %2383 = vdwg.mxu0
        %v2386 = vunpack.c.l.b16 %v2052
        %v2387 = vunpack.c.l.b16 %v2053
        %v2388 = vpack.c.b16 %v2387, %v2386
        %v2390 = vsel %vm1673, %v2388, 0
        %v2393 = vsel %vm2066, %v436, 0
        %2395 = vmatpush.bf16.msra.mxu0 0
        %2396 = vmatpush.bf16.msra.mxu0 0
        %2397 = vmatpush.bf16.msra.mxu0 0
        %2398 = vmatpush.bf16.msra.mxu0 0
        %2399 = vmatpush.bf16.msra.mxu0 0
        %2400 = vmatpush.bf16.msra.mxu0 0
        %2401 = vmatpush.bf16.msra.mxu0 0
        %2402 = vmatpush.bf16.msra.mxu0 %v2393
        %2403 = vmatmul.bf16.gmra.mxu0 %v2390
        %v2404 = vpop.f32.mrf.mxu0
        %v2405 = vadd.f32 0.0, %v2404
        %v2406 = vpop.f32.mrf.mxu0
        %v2407 = vadd.f32 0.0, %v2406
        %2408 = vdwg.mxu0
        %v2411 = vunpack.c.l.b16 %v2054
        %v2412 = vunpack.c.l.b16 %v2055
        %v2413 = vpack.c.b16 %v2412, %v2411
        %v2415 = vsel %vm1673, %v2413, 0
        %v2418 = vsel %vm2066, %v437, 0
        %2420 = vmatpush.bf16.msra.mxu0 0
        %2421 = vmatpush.bf16.msra.mxu0 0
        %2422 = vmatpush.bf16.msra.mxu0 0
        %2423 = vmatpush.bf16.msra.mxu0 0
        %2424 = vmatpush.bf16.msra.mxu0 0
        %2425 = vmatpush.bf16.msra.mxu0 0
        %2426 = vmatpush.bf16.msra.mxu0 0
        %2427 = vmatpush.bf16.msra.mxu0 %v2418
        %2428 = vmatmul.bf16.gmra.mxu0 %v2415
        %v2429 = vpop.f32.mrf.mxu0
        %v2430 = vadd.f32 0.0, %v2429
        %v2431 = vpop.f32.mrf.mxu0
        %v2432 = vadd.f32 0.0, %v2431
        %2433 = vdwg.mxu0
        %v2436 = vunpack.c.l.b16 %v2056
        %v2437 = vunpack.c.l.b16 %v2057
        %v2438 = vpack.c.b16 %v2437, %v2436
        %v2440 = vsel %vm1673, %v2438, 0
        %v2443 = vsel %vm2066, %v438, 0
        %2445 = vmatpush.bf16.msra.mxu0 0
        %2446 = vmatpush.bf16.msra.mxu0 0
        %2447 = vmatpush.bf16.msra.mxu0 0
        %2448 = vmatpush.bf16.msra.mxu0 0
        %2449 = vmatpush.bf16.msra.mxu0 0
        %2450 = vmatpush.bf16.msra.mxu0 0
        %2451 = vmatpush.bf16.msra.mxu0 0
        %2452 = vmatpush.bf16.msra.mxu0 %v2443
        %2453 = vmatmul.bf16.gmra.mxu0 %v2440
        %v2454 = vpop.f32.mrf.mxu0
        %v2455 = vadd.f32 0.0, %v2454
        %v2456 = vpop.f32.mrf.mxu0
        %v2457 = vadd.f32 0.0, %v2456
        %2458 = vdwg.mxu0
        %2459 = vst [vmem:[%s378] sm:$0xff] %v2080
        %2460 = vst [vmem:[%s378 + $0x8] sm:$0xff] %v2082
        %2461 = vst [vmem:[%s378 + $0x10] sm:$0xff] %v2105
        %2462 = vst [vmem:[%s378 + $0x18] sm:$0xff] %v2107
        %2463 = vst [vmem:[%s378 + $0x20] sm:$0xff] %v2130
        %2464 = vst [vmem:[%s378 + $0x28] sm:$0xff] %v2132
        %2465 = vst [vmem:[%s378 + $0x30] sm:$0xff] %v2155
        %2466 = vst [vmem:[%s378 + $0x38] sm:$0xff] %v2157
        %2467 = vst [vmem:[%s378 + $0x40] sm:$0xff] %v2180
        %2468 = vst [vmem:[%s378 + $0x48] sm:$0xff] %v2182
        %2469 = vst [vmem:[%s378 + $0x50] sm:$0xff] %v2205
        %2470 = vst [vmem:[%s378 + $0x58] sm:$0xff] %v2207
        %2471 = vst [vmem:[%s378 + $0x60] sm:$0xff] %v2230
        %2472 = vst [vmem:[%s378 + $0x68] sm:$0xff] %v2232
        %2473 = vst [vmem:[%s378 + $0x70] sm:$0xff] %v2255
        %2474 = vst [vmem:[%s378 + $0x78] sm:$0xff] %v2257
        %2475 = vst [vmem:[%s378 + $0x80] sm:$0xff] %v2280
        %2476 = vst [vmem:[%s378 + $0x88] sm:$0xff] %v2282
        %2477 = vst [vmem:[%s378 + $0x90] sm:$0xff] %v2305
        %2478 = vst [vmem:[%s378 + $0x98] sm:$0xff] %v2307
        %2479 = vst [vmem:[%s378 + $0xa0] sm:$0xff] %v2330
        %2480 = vst [vmem:[%s378 + $0xa8] sm:$0xff] %v2332
        %2481 = vst [vmem:[%s378 + $0xb0] sm:$0xff] %v2355
        %2482 = vst [vmem:[%s378 + $0xb8] sm:$0xff] %v2357
        %2483 = vst [vmem:[%s378 + $0xc0] sm:$0xff] %v2380
        %2484 = vst [vmem:[%s378 + $0xc8] sm:$0xff] %v2382
        %2485 = vst [vmem:[%s378 + $0xd0] sm:$0xff] %v2405
        %2486 = vst [vmem:[%s378 + $0xd8] sm:$0xff] %v2407
        %2487 = vst [vmem:[%s378 + $0xe0] sm:$0xff] %v2430
        %2488 = vst [vmem:[%s378 + $0xe8] sm:$0xff] %v2432
        %2489 = vst [vmem:[%s378 + $0xf0] sm:$0xff] %v2455
        %2490 = vst [vmem:[%s378 + $0xf8] sm:$0xff] %v2457
        %vm2491 = vcmask 130048
        %v2492 = vsel %vm2491, %v1475, -inf
        %2493 = vmax.xlane.f32.xlu0 %v2492
        %v2494 = vpop.xlane.xlu0 %2493
        %v2495 = vsel %vm2491, %v1488, -inf
        %2496 = vmax.xlane.f32.xlu0 %v2495
        %v2497 = vpop.xlane.xlu0 %2496
        %v2498 = vsel %vm2491, %v1501, -inf
        %2499 = vmax.xlane.f32.xlu0 %v2498
        %v2500 = vpop.xlane.xlu0 %2499
        %v2501 = vsel %vm2491, %v1514, -inf
        %2502 = vmax.xlane.f32.xlu0 %v2501
        %v2503 = vpop.xlane.xlu0 %2502
        %v2504 = vsel %vm2491, %v1527, -inf
        %2505 = vmax.xlane.f32.xlu0 %v2504
        %v2506 = vpop.xlane.xlu0 %2505
        %v2507 = vsel %vm2491, %v1540, -inf
        %2508 = vmax.xlane.f32.xlu0 %v2507
        %v2509 = vpop.xlane.xlu0 %2508
        %v2510 = vsel %vm2491, %v1553, -inf
        %2511 = vmax.xlane.f32.xlu0 %v2510
        %v2512 = vpop.xlane.xlu0 %2511
        %v2513 = vsel %vm2491, %v1566, -inf
        %2514 = vmax.xlane.f32.xlu0 %v2513
        %v2515 = vpop.xlane.xlu0 %2514
        %v2516 = vsel %vm2491, %v1579, -inf
        %2517 = vmax.xlane.f32.xlu0 %v2516
        %v2518 = vpop.xlane.xlu0 %2517
        %v2519 = vsel %vm2491, %v1592, -inf
        %2520 = vmax.xlane.f32.xlu0 %v2519
        %v2521 = vpop.xlane.xlu0 %2520
        %v2522 = vsel %vm2491, %v1605, -inf
        %2523 = vmax.xlane.f32.xlu0 %v2522
        %v2524 = vpop.xlane.xlu0 %2523
        %v2525 = vsel %vm2491, %v1618, -inf
        %2526 = vmax.xlane.f32.xlu0 %v2525
        %v2527 = vpop.xlane.xlu0 %2526
        %v2528 = vsel %vm2491, %v1631, -inf
        %2529 = vmax.xlane.f32.xlu0 %v2528
        %v2530 = vpop.xlane.xlu0 %2529
        %v2531 = vsel %vm2491, %v1644, -inf
        %2532 = vmax.xlane.f32.xlu0 %v2531
        %v2533 = vpop.xlane.xlu0 %2532
        %v2534 = vsel %vm2491, %v1657, -inf
        %2535 = vmax.xlane.f32.xlu0 %v2534
        %v2536 = vpop.xlane.xlu0 %2535
        %v2537 = vsel %vm2491, %v1670, -inf
        %2538 = vmax.xlane.f32.xlu0 %v2537
        %v2539 = vpop.xlane.xlu0 %2538
        %v2540 = vsub.f32 %v1475, %v2494
        %v2541 = vsub.f32 %v1488, %v2497
        %v2542 = vsub.f32 %v1501, %v2500
        %v2543 = vsub.f32 %v1514, %v2503
        %v2544 = vsub.f32 %v1527, %v2506
        %v2545 = vsub.f32 %v1540, %v2509
        %v2546 = vsub.f32 %v1553, %v2512
        %v2547 = vsub.f32 %v1566, %v2515
        %v2548 = vsub.f32 %v1579, %v2518
        %v2549 = vsub.f32 %v1592, %v2521
        %v2550 = vsub.f32 %v1605, %v2524
        %v2551 = vsub.f32 %v1618, %v2527
        %v2552 = vsub.f32 %v1631, %v2530
        %v2553 = vsub.f32 %v1644, %v2533
        %v2554 = vsub.f32 %v1657, %v2536
        %v2555 = vsub.f32 %v1670, %v2539
        %v2556 = vmul.f32 %v2540, 1.442695
        %v2557 = vpow.pop %v2556
        %v2558 = vmul.f32 %v2541, 1.442695
        %v2559 = vpow.pop %v2558
        %v2560 = vmul.f32 %v2542, 1.442695
        %v2561 = vpow.pop %v2560
        %v2562 = vmul.f32 %v2543, 1.442695
        %v2563 = vpow.pop %v2562
        %v2564 = vmul.f32 %v2544, 1.442695
        %v2565 = vpow.pop %v2564
        %v2566 = vmul.f32 %v2545, 1.442695
        %v2567 = vpow.pop %v2566
        %v2568 = vmul.f32 %v2546, 1.442695
        %v2569 = vpow.pop %v2568
        %v2570 = vmul.f32 %v2547, 1.442695
        %v2571 = vpow.pop %v2570
        %v2572 = vmul.f32 %v2548, 1.442695
        %v2573 = vpow.pop %v2572
        %v2574 = vmul.f32 %v2549, 1.442695
        %v2575 = vpow.pop %v2574
        %v2576 = vmul.f32 %v2550, 1.442695
        %v2577 = vpow.pop %v2576
        %v2578 = vmul.f32 %v2551, 1.442695
        %v2579 = vpow.pop %v2578
        %v2580 = vmul.f32 %v2552, 1.442695
        %v2581 = vpow.pop %v2580
        %v2582 = vmul.f32 %v2553, 1.442695
        %v2583 = vpow.pop %v2582
        %v2584 = vmul.f32 %v2554, 1.442695
        %v2585 = vpow.pop %v2584
        %v2586 = vmul.f32 %v2555, 1.442695
        %v2587 = vpow.pop %v2586
        %v2588 = vsel %vm2491, %v2557, 0.0
        %2589 = vadd.xlane.f32.xlu0 %v2588
        %v2590 = vpop.xlane.xlu0 %2589
        %v2591 = vsel %vm2491, %v2559, 0.0
        %2592 = vadd.xlane.f32.xlu0 %v2591
        %v2593 = vpop.xlane.xlu0 %2592
        %v2594 = vsel %vm2491, %v2561, 0.0
        %2595 = vadd.xlane.f32.xlu0 %v2594
        %v2596 = vpop.xlane.xlu0 %2595
        %v2597 = vsel %vm2491, %v2563, 0.0
        %2598 = vadd.xlane.f32.xlu0 %v2597
        %v2599 = vpop.xlane.xlu0 %2598
        %v2600 = vsel %vm2491, %v2565, 0.0
        %2601 = vadd.xlane.f32.xlu0 %v2600
        %v2602 = vpop.xlane.xlu0 %2601
        %v2603 = vsel %vm2491, %v2567, 0.0
        %2604 = vadd.xlane.f32.xlu0 %v2603
        %v2605 = vpop.xlane.xlu0 %2604
        %v2606 = vsel %vm2491, %v2569, 0.0
        %2607 = vadd.xlane.f32.xlu0 %v2606
        %v2608 = vpop.xlane.xlu0 %2607
        %v2609 = vsel %vm2491, %v2571, 0.0
        %2610 = vadd.xlane.f32.xlu0 %v2609
        %v2611 = vpop.xlane.xlu0 %2610
        %v2612 = vsel %vm2491, %v2573, 0.0
        %2613 = vadd.xlane.f32.xlu0 %v2612
        %v2614 = vpop.xlane.xlu0 %2613
        %v2615 = vsel %vm2491, %v2575, 0.0
        %2616 = vadd.xlane.f32.xlu0 %v2615
        %v2617 = vpop.xlane.xlu0 %2616
        %v2618 = vsel %vm2491, %v2577, 0.0
        %2619 = vadd.xlane.f32.xlu0 %v2618
        %v2620 = vpop.xlane.xlu0 %2619
        %v2621 = vsel %vm2491, %v2579, 0.0
        %2622 = vadd.xlane.f32.xlu0 %v2621
        %v2623 = vpop.xlane.xlu0 %2622
        %v2624 = vsel %vm2491, %v2581, 0.0
        %2625 = vadd.xlane.f32.xlu0 %v2624
        %v2626 = vpop.xlane.xlu0 %2625
        %v2627 = vsel %vm2491, %v2583, 0.0
        %2628 = vadd.xlane.f32.xlu0 %v2627
        %v2629 = vpop.xlane.xlu0 %2628
        %v2630 = vsel %vm2491, %v2585, 0.0
        %2631 = vadd.xlane.f32.xlu0 %v2630
        %v2632 = vpop.xlane.xlu0 %2631
        %v2633 = vsel %vm2491, %v2587, 0.0
        %2634 = vadd.xlane.f32.xlu0 %v2633
        %v2635 = vpop.xlane.xlu0 %2634
        %v2636 = vrcp.pop %v2590
        %v2637 = vrcp.pop %v2593
        %v2638 = vrcp.pop %v2596
        %v2639 = vrcp.pop %v2599
        %v2640 = vrcp.pop %v2602
        %v2641 = vrcp.pop %v2605
        %v2642 = vrcp.pop %v2608
        %v2643 = vrcp.pop %v2611
        %v2644 = vrcp.pop %v2614
        %v2645 = vrcp.pop %v2617
        %v2646 = vrcp.pop %v2620
        %v2647 = vrcp.pop %v2623
        %v2648 = vrcp.pop %v2626
        %v2649 = vrcp.pop %v2629
        %v2650 = vrcp.pop %v2632
        %v2651 = vrcp.pop %v2635
        %v2652 = vmul.f32 %v2557, %v2636
        %v2653 = vmul.f32 %v2559, %v2637
        %v2654 = vmul.f32 %v2561, %v2638
        %v2655 = vmul.f32 %v2563, %v2639
        %v2656 = vmul.f32 %v2565, %v2640
        %v2657 = vmul.f32 %v2567, %v2641
        %v2658 = vmul.f32 %v2569, %v2642
        %v2659 = vmul.f32 %v2571, %v2643
        %v2660 = vmul.f32 %v2573, %v2644
        %v2661 = vmul.f32 %v2575, %v2645
        %v2662 = vmul.f32 %v2577, %v2646
        %v2663 = vmul.f32 %v2579, %v2647
        %v2664 = vmul.f32 %v2581, %v2648
        %v2665 = vmul.f32 %v2583, %v2649
        %v2666 = vmul.f32 %v2585, %v2650
        %v2667 = vmul.f32 %v2587, %v2651
        %v2668 = vpack.c.bf16 %v2652, %v2652
        %v2669 = vpack.c.bf16 %v2653, %v2653
        %v2670 = vpack.c.bf16 %v2654, %v2654
        %v2671 = vpack.c.bf16 %v2655, %v2655
        %v2672 = vpack.c.bf16 %v2656, %v2656
        %v2673 = vpack.c.bf16 %v2657, %v2657
        %v2674 = vpack.c.bf16 %v2658, %v2658
        %v2675 = vpack.c.bf16 %v2659, %v2659
        %v2676 = vpack.c.bf16 %v2660, %v2660
        %v2677 = vpack.c.bf16 %v2661, %v2661
        %v2678 = vpack.c.bf16 %v2662, %v2662
        %v2679 = vpack.c.bf16 %v2663, %v2663
        %v2680 = vpack.c.bf16 %v2664, %v2664
        %v2681 = vpack.c.bf16 %v2665, %v2665
        %v2682 = vpack.c.bf16 %v2666, %v2666
        %v2683 = vpack.c.bf16 %v2667, %v2667
        %v2685 = vsel %vm2491, %v2668, 0
        %2687 = vmatpush.bf16.msra.mxu0 0
        %2688 = vmatpush.bf16.msra.mxu0 0
        %2689 = vmatpush.bf16.msra.mxu0 0
        %2690 = vmatpush.bf16.msra.mxu0 0
        %2691 = vmatpush.bf16.msra.mxu0 0
        %2692 = vmatpush.bf16.msra.mxu0 0
        %2693 = vmatpush.bf16.msra.mxu0 0
        %2694 = vmatpush.bf16.msra.mxu0 %v537
        %2695 = vmatmul.bf16.gmra.mxu0 %v2685
        %v2696 = vpop.f32.mrf.mxu0
        %v2697 = vadd.f32 0.0, %v2696
        %v2698 = vpop.f32.mrf.mxu0
        %2699 = vdwg.mxu0
        %v2701 = vsel %vm2491, %v2669, 0
        %2703 = vmatpush.bf16.msra.mxu0 0
        %2704 = vmatpush.bf16.msra.mxu0 0
        %2705 = vmatpush.bf16.msra.mxu0 0
        %2706 = vmatpush.bf16.msra.mxu0 0
        %2707 = vmatpush.bf16.msra.mxu0 0
        %2708 = vmatpush.bf16.msra.mxu0 0
        %2709 = vmatpush.bf16.msra.mxu0 0
        %2710 = vmatpush.bf16.msra.mxu0 %v538
        %2711 = vmatmul.bf16.gmra.mxu0 %v2701
        %v2712 = vpop.f32.mrf.mxu0
        %v2713 = vadd.f32 0.0, %v2712
        %v2714 = vpop.f32.mrf.mxu0
        %2715 = vdwg.mxu0
        %v2717 = vsel %vm2491, %v2670, 0
        %2719 = vmatpush.bf16.msra.mxu0 0
        %2720 = vmatpush.bf16.msra.mxu0 0
        %2721 = vmatpush.bf16.msra.mxu0 0
        %2722 = vmatpush.bf16.msra.mxu0 0
        %2723 = vmatpush.bf16.msra.mxu0 0
        %2724 = vmatpush.bf16.msra.mxu0 0
        %2725 = vmatpush.bf16.msra.mxu0 0
        %2726 = vmatpush.bf16.msra.mxu0 %v539
        %2727 = vmatmul.bf16.gmra.mxu0 %v2717
        %v2728 = vpop.f32.mrf.mxu0
        %v2729 = vadd.f32 0.0, %v2728
        %v2730 = vpop.f32.mrf.mxu0
        %2731 = vdwg.mxu0
        %v2733 = vsel %vm2491, %v2671, 0
        %2735 = vmatpush.bf16.msra.mxu0 0
        %2736 = vmatpush.bf16.msra.mxu0 0
        %2737 = vmatpush.bf16.msra.mxu0 0
        %2738 = vmatpush.bf16.msra.mxu0 0
        %2739 = vmatpush.bf16.msra.mxu0 0
        %2740 = vmatpush.bf16.msra.mxu0 0
        %2741 = vmatpush.bf16.msra.mxu0 0
        %2742 = vmatpush.bf16.msra.mxu0 %v540
        %2743 = vmatmul.bf16.gmra.mxu0 %v2733
        %v2744 = vpop.f32.mrf.mxu0
        %v2745 = vadd.f32 0.0, %v2744
        %v2746 = vpop.f32.mrf.mxu0
        %2747 = vdwg.mxu0
        %v2749 = vsel %vm2491, %v2672, 0
        %2751 = vmatpush.bf16.msra.mxu0 0
        %2752 = vmatpush.bf16.msra.mxu0 0
        %2753 = vmatpush.bf16.msra.mxu0 0
        %2754 = vmatpush.bf16.msra.mxu0 0
        %2755 = vmatpush.bf16.msra.mxu0 0
        %2756 = vmatpush.bf16.msra.mxu0 0
        %2757 = vmatpush.bf16.msra.mxu0 0
        %2758 = vmatpush.bf16.msra.mxu0 %v541
        %2759 = vmatmul.bf16.gmra.mxu0 %v2749
        %v2760 = vpop.f32.mrf.mxu0
        %v2761 = vadd.f32 0.0, %v2760
        %v2762 = vpop.f32.mrf.mxu0
        %2763 = vdwg.mxu0
        %v2765 = vsel %vm2491, %v2673, 0
        %2767 = vmatpush.bf16.msra.mxu0 0
        %2768 = vmatpush.bf16.msra.mxu0 0
        %2769 = vmatpush.bf16.msra.mxu0 0
        %2770 = vmatpush.bf16.msra.mxu0 0
        %2771 = vmatpush.bf16.msra.mxu0 0
        %2772 = vmatpush.bf16.msra.mxu0 0
        %2773 = vmatpush.bf16.msra.mxu0 0
        %2774 = vmatpush.bf16.msra.mxu0 %v542
        %2775 = vmatmul.bf16.gmra.mxu0 %v2765
        %v2776 = vpop.f32.mrf.mxu0
        %v2777 = vadd.f32 0.0, %v2776
        %v2778 = vpop.f32.mrf.mxu0
        %2779 = vdwg.mxu0
        %v2781 = vsel %vm2491, %v2674, 0
        %2783 = vmatpush.bf16.msra.mxu0 0
        %2784 = vmatpush.bf16.msra.mxu0 0
        %2785 = vmatpush.bf16.msra.mxu0 0
        %2786 = vmatpush.bf16.msra.mxu0 0
        %2787 = vmatpush.bf16.msra.mxu0 0
        %2788 = vmatpush.bf16.msra.mxu0 0
        %2789 = vmatpush.bf16.msra.mxu0 0
        %2790 = vmatpush.bf16.msra.mxu0 %v543
        %2791 = vmatmul.bf16.gmra.mxu0 %v2781
        %v2792 = vpop.f32.mrf.mxu0
        %v2793 = vadd.f32 0.0, %v2792
        %v2794 = vpop.f32.mrf.mxu0
        %2795 = vdwg.mxu0
        %v2797 = vsel %vm2491, %v2675, 0
        %2799 = vmatpush.bf16.msra.mxu0 0
        %2800 = vmatpush.bf16.msra.mxu0 0
        %2801 = vmatpush.bf16.msra.mxu0 0
        %2802 = vmatpush.bf16.msra.mxu0 0
        %2803 = vmatpush.bf16.msra.mxu0 0
        %2804 = vmatpush.bf16.msra.mxu0 0
        %2805 = vmatpush.bf16.msra.mxu0 0
        %2806 = vmatpush.bf16.msra.mxu0 %v544
        %2807 = vmatmul.bf16.gmra.mxu0 %v2797
        %v2808 = vpop.f32.mrf.mxu0
        %v2809 = vadd.f32 0.0, %v2808
        %v2810 = vpop.f32.mrf.mxu0
        %2811 = vdwg.mxu0
        %v2813 = vsel %vm2491, %v2676, 0
        %2815 = vmatpush.bf16.msra.mxu0 0
        %2816 = vmatpush.bf16.msra.mxu0 0
        %2817 = vmatpush.bf16.msra.mxu0 0
        %2818 = vmatpush.bf16.msra.mxu0 0
        %2819 = vmatpush.bf16.msra.mxu0 0
        %2820 = vmatpush.bf16.msra.mxu0 0
        %2821 = vmatpush.bf16.msra.mxu0 0
        %2822 = vmatpush.bf16.msra.mxu0 %v545
        %2823 = vmatmul.bf16.gmra.mxu0 %v2813
        %v2824 = vpop.f32.mrf.mxu0
        %v2825 = vadd.f32 0.0, %v2824
        %v2826 = vpop.f32.mrf.mxu0
        %2827 = vdwg.mxu0
        %v2829 = vsel %vm2491, %v2677, 0
        %2831 = vmatpush.bf16.msra.mxu0 0
        %2832 = vmatpush.bf16.msra.mxu0 0
        %2833 = vmatpush.bf16.msra.mxu0 0
        %2834 = vmatpush.bf16.msra.mxu0 0
        %2835 = vmatpush.bf16.msra.mxu0 0
        %2836 = vmatpush.bf16.msra.mxu0 0
        %2837 = vmatpush.bf16.msra.mxu0 0
        %2838 = vmatpush.bf16.msra.mxu0 %v546
        %2839 = vmatmul.bf16.gmra.mxu0 %v2829
        %v2840 = vpop.f32.mrf.mxu0
        %v2841 = vadd.f32 0.0, %v2840
        %v2842 = vpop.f32.mrf.mxu0
        %2843 = vdwg.mxu0
        %v2845 = vsel %vm2491, %v2678, 0
        %2847 = vmatpush.bf16.msra.mxu0 0
        %2848 = vmatpush.bf16.msra.mxu0 0
        %2849 = vmatpush.bf16.msra.mxu0 0
        %2850 = vmatpush.bf16.msra.mxu0 0
        %2851 = vmatpush.bf16.msra.mxu0 0
        %2852 = vmatpush.bf16.msra.mxu0 0
        %2853 = vmatpush.bf16.msra.mxu0 0
        %2854 = vmatpush.bf16.msra.mxu0 %v547
        %2855 = vmatmul.bf16.gmra.mxu0 %v2845
        %v2856 = vpop.f32.mrf.mxu0
        %v2857 = vadd.f32 0.0, %v2856
        %v2858 = vpop.f32.mrf.mxu0
        %2859 = vdwg.mxu0
        %v2861 = vsel %vm2491, %v2679, 0
        %2863 = vmatpush.bf16.msra.mxu0 0
        %2864 = vmatpush.bf16.msra.mxu0 0
        %2865 = vmatpush.bf16.msra.mxu0 0
        %2866 = vmatpush.bf16.msra.mxu0 0
        %2867 = vmatpush.bf16.msra.mxu0 0
        %2868 = vmatpush.bf16.msra.mxu0 0
        %2869 = vmatpush.bf16.msra.mxu0 0
        %2870 = vmatpush.bf16.msra.mxu0 %v548
        %2871 = vmatmul.bf16.gmra.mxu0 %v2861
        %v2872 = vpop.f32.mrf.mxu0
        %v2873 = vadd.f32 0.0, %v2872
        %v2874 = vpop.f32.mrf.mxu0
        %2875 = vdwg.mxu0
        %v2877 = vsel %vm2491, %v2680, 0
        %2879 = vmatpush.bf16.msra.mxu0 0
        %2880 = vmatpush.bf16.msra.mxu0 0
        %2881 = vmatpush.bf16.msra.mxu0 0
        %2882 = vmatpush.bf16.msra.mxu0 0
        %2883 = vmatpush.bf16.msra.mxu0 0
        %2884 = vmatpush.bf16.msra.mxu0 0
        %2885 = vmatpush.bf16.msra.mxu0 0
        %2886 = vmatpush.bf16.msra.mxu0 %v549
        %2887 = vmatmul.bf16.gmra.mxu0 %v2877
        %v2888 = vpop.f32.mrf.mxu0
        %v2889 = vadd.f32 0.0, %v2888
        %v2890 = vpop.f32.mrf.mxu0
        %2891 = vdwg.mxu0
        %v2893 = vsel %vm2491, %v2681, 0
        %2895 = vmatpush.bf16.msra.mxu0 0
        %2896 = vmatpush.bf16.msra.mxu0 0
        %2897 = vmatpush.bf16.msra.mxu0 0
        %2898 = vmatpush.bf16.msra.mxu0 0
        %2899 = vmatpush.bf16.msra.mxu0 0
        %2900 = vmatpush.bf16.msra.mxu0 0
        %2901 = vmatpush.bf16.msra.mxu0 0
        %2902 = vmatpush.bf16.msra.mxu0 %v550
        %2903 = vmatmul.bf16.gmra.mxu0 %v2893
        %v2904 = vpop.f32.mrf.mxu0
        %v2905 = vadd.f32 0.0, %v2904
        %v2906 = vpop.f32.mrf.mxu0
        %2907 = vdwg.mxu0
        %v2909 = vsel %vm2491, %v2682, 0
        %2911 = vmatpush.bf16.msra.mxu0 0
        %2912 = vmatpush.bf16.msra.mxu0 0
        %2913 = vmatpush.bf16.msra.mxu0 0
        %2914 = vmatpush.bf16.msra.mxu0 0
        %2915 = vmatpush.bf16.msra.mxu0 0
        %2916 = vmatpush.bf16.msra.mxu0 0
        %2917 = vmatpush.bf16.msra.mxu0 0
        %2918 = vmatpush.bf16.msra.mxu0 %v551
        %2919 = vmatmul.bf16.gmra.mxu0 %v2909
        %v2920 = vpop.f32.mrf.mxu0
        %v2921 = vadd.f32 0.0, %v2920
        %v2922 = vpop.f32.mrf.mxu0
        %2923 = vdwg.mxu0
        %v2925 = vsel %vm2491, %v2683, 0
        %2927 = vmatpush.bf16.msra.mxu0 0
        %2928 = vmatpush.bf16.msra.mxu0 0
        %2929 = vmatpush.bf16.msra.mxu0 0
        %2930 = vmatpush.bf16.msra.mxu0 0
        %2931 = vmatpush.bf16.msra.mxu0 0
        %2932 = vmatpush.bf16.msra.mxu0 0
        %2933 = vmatpush.bf16.msra.mxu0 0
        %2934 = vmatpush.bf16.msra.mxu0 %v552
        %2935 = vmatmul.bf16.gmra.mxu0 %v2925
        %v2936 = vpop.f32.mrf.mxu0
        %v2937 = vadd.f32 0.0, %v2936
        %v2938 = vpop.f32.mrf.mxu0
        %2939 = vdwg.mxu0
        %2940 = vst [vmem:[%s385] sm:$0xff] %v2697
        %2941 = vst [vmem:[%s385 + $0x8] sm:$0xff] %v2713
        %2942 = vst [vmem:[%s385 + $0x10] sm:$0xff] %v2729
        %2943 = vst [vmem:[%s385 + $0x18] sm:$0xff] %v2745
        %2944 = vst [vmem:[%s385 + $0x20] sm:$0xff] %v2761
        %2945 = vst [vmem:[%s385 + $0x28] sm:$0xff] %v2777
        %2946 = vst [vmem:[%s385 + $0x30] sm:$0xff] %v2793
        %2947 = vst [vmem:[%s385 + $0x38] sm:$0xff] %v2809
        %2948 = vst [vmem:[%s385 + $0x40] sm:$0xff] %v2825
        %2949 = vst [vmem:[%s385 + $0x48] sm:$0xff] %v2841
        %2950 = vst [vmem:[%s385 + $0x50] sm:$0xff] %v2857
        %2951 = vst [vmem:[%s385 + $0x58] sm:$0xff] %v2873
        %2952 = vst [vmem:[%s385 + $0x60] sm:$0xff] %v2889
        %2953 = vst [vmem:[%s385 + $0x68] sm:$0xff] %v2905
        %2954 = vst [vmem:[%s385 + $0x70] sm:$0xff] %v2921
        %2955 = vst [vmem:[%s385 + $0x78] sm:$0xff] %v2937
        %s2956 = sand.u32 %s176, 1
        %s2957 = scalar_lea.sflag [#allocation4], %s2956
        %s2958 = sand.u32 %s176, 1
        %s2959 = smul.addr %s2958, 256
        %s2960 = scalar_lea.vmem [#allocation10], %s2959
        %s2961 = sand.u32 %s202, 1
        %s2962 = scalar_lea.sflag [#allocation12], %s2961
        %s2963 = sand.u32 %s202, 1
        %s2964 = smul.addr %s2963, 128
        %s2965 = scalar_lea.vmem [#allocation11], %s2964
        // Predicated region
        $region61: #{tpu_custom_call.1} parent=43 // pred_check
          %p2966 = pneg %p186
        $region62: #{tpu_custom_call.1} parent=43 // pred_check_branch
          %2968 = sbr.rel (%p2966) target = $region64
        $region63: #{tpu_custom_call.1} parent=43 // pred_region
          %s2969 = smul.u32 16, %s32
          %2971 = vsyncadd %s2957, 0
          %s2972 = smul.addr %s2969, 2
          %s2973 = smul.addr %s2972, 8
          %s2974 = scalar_lea.hbm %s6, %s2973
          %s2975 = sshll.u32 %s2960, 4
          %s2976 = int_to_ptr.vmem [resolvable:$true] %s2975
          %s2977 = sshll.u32 %s2974, 4
          %s2978 = int_to_ptr.hbm [resolvable:$true] %s2977
          %2983 = dma.vmem_to_hbm [thread:$0]  %s2976, 4096, %s2978, %s2957, 128, 128, 8
        $region64: #{tpu_custom_call.1} parent=43 // pred_fallthru
          _
        // Predicated region
        $region65: #{tpu_custom_call.1} parent=43 // pred_check
          %p2984 = pneg %p212
        $region66: #{tpu_custom_call.1} parent=43 // pred_check_branch
          %2986 = sbr.rel (%p2984) target = $region68
        $region67: #{tpu_custom_call.1} parent=43 // pred_region
          %s2987 = smul.u32 16, %s32
          %2989 = vsyncadd %s2962, 0
          %s2990 = smul.addr %s2987, 8
          %s2991 = scalar_lea.hbm %s7, %s2990
          %s2992 = sshll.u32 %s2965, 4
          %s2993 = int_to_ptr.vmem [resolvable:$true] %s2992
          %s2994 = sshll.u32 %s2991, 4
          %s2995 = int_to_ptr.hbm [resolvable:$true] %s2994
          %3000 = dma.vmem_to_hbm [thread:$0]  %s2993, 2048, %s2995, %s2962, 128, 128, 8
        $region68: #{tpu_custom_call.1} parent=43 // pred_fallthru
          _
      $region44: #{tpu_custom_call.1} parent=5 // pred_fallthru
        _
      %p3001 = scmp.le.s32.totalorder 2, %s27
      // Predicated region
      $region69: #{tpu_custom_call.1} parent=5 // pred_check
        %p3002 = pneg %p3001
      $region70: #{tpu_custom_call.1} parent=5 // pred_check_branch
        %3004 = sbr.rel (%p3002) target = $region72
      $region71: #{tpu_custom_call.1} parent=5 // pred_region
        %s3005 = ssub.s32 %s27, 2
        // Predicated region
        $region73: #{tpu_custom_call.1} parent=71 // pred_check
          %p3006 = pneg %p192
        $region74: #{tpu_custom_call.1} parent=71 // pred_check_branch
          %3008 = sbr.rel (%p3006) target = $region76
        $region75: #{tpu_custom_call.1} parent=71 // pred_region
          %s3009 = sand.u32 %s177, 1
          %s3010 = scalar_lea.sflag [#allocation4], %s3009
          %s3011 = sand.u32 %s177, 1
          %s3012 = smul.addr %s3011, 256
          %s3013 = scalar_lea.vmem [#allocation10], %s3012
          %3015 = dma.done %s3010, 4096
        $region76: #{tpu_custom_call.1} parent=71 // pred_fallthru
          _
        // Predicated region
        $region77: #{tpu_custom_call.1} parent=71 // pred_check
          %p3016 = pneg %p218
        $region78: #{tpu_custom_call.1} parent=71 // pred_check_branch
          %3018 = sbr.rel (%p3016) target = $region80
        $region79: #{tpu_custom_call.1} parent=71 // pred_region
          %s3019 = sand.u32 %s203, 1
          %s3020 = scalar_lea.sflag [#allocation12], %s3019
          %s3021 = sand.u32 %s203, 1
          %s3022 = smul.addr %s3021, 128
          %s3023 = scalar_lea.vmem [#allocation11], %s3022
          %3025 = dma.done %s3020, 2048
        $region80: #{tpu_custom_call.1} parent=71 // pred_fallthru
          _
      $region72: #{tpu_custom_call.1} parent=5 // pred_fallthru
        _
    $region6: #{tpu_custom_call.1} parent=1 // loop_footer
      %s31 = sadd.s32 1, %s27
    $region7: #{tpu_custom_call.1} parent=1 // loop_footer_branch
      %26 = sbr.rel target = $region3
    $region8: #{tpu_custom_call.1} parent=1 // loop_exit
      _
    %3026 = vsyncpa [#allocation3], 1
    %s3027 = scalar_lea.sflag [#allocation3], 1
    %3028 = vsyncpa %s3027, 1
    %3029 = vsyncpa [#allocation6], 1
    %s3030 = scalar_lea.sflag [#allocation6], 1
    %3031 = vsyncpa %s3030, 1
    %3032 = vsyncpa [#allocation9], 1
    %3033 = vsyncpa [#allocation4], 1
    %s3034 = scalar_lea.sflag [#allocation4], 1
    %3035 = vsyncpa %s3034, 1
    %3036 = vsyncpa [#allocation12], 1
    %s3037 = scalar_lea.sflag [#allocation12], 1
    %3038 = vsyncpa %s3037, 1

</llo_original>
